<compile_context>
chip_gen: v7x
topology: tpu7x:2x2x1
jax: 0.10.0
libtpu: 0.0.40
codegen_flags: <defaults>
</compile_context>

<pallas_src>
import jax
import jax.numpy as jnp
from jax.experimental import pallas as pl
from jax.experimental.pallas import tpu as pltpu


def _se_pointwise_kernel(w_ref, s_ref, x_hbm, o_ref, x_vmem, dma_sem):
    # w_ref : [Cout, Cin] bf16  (VMEM, pre-cast 1x1 conv weight)
    # s_ref : [1, Cin]          (VMEM, pre-sigmoid SE logits)
    # x_hbm : [Cin, HW]         (HBM, activations; copied manually)
    # o_ref : [Cout, HW]        (VMEM output)
    # x_vmem: [Cin, HW]         (VMEM scratch for the x copy)

    # Kick off the big activation DMA first so the gate prep hides under it.
    cp = pltpu.make_async_copy(x_hbm, x_vmem, dma_sem)
    cp.start()

    # VPU/EUP work overlapped with the x DMA:
    gate = jax.nn.sigmoid(s_ref[...].astype(jnp.float32))                # [1, Cin]
    wg = (w_ref[...].astype(jnp.float32) * gate).astype(jnp.bfloat16)    # [Cout, Cin]

    cp.wait()
    acc = jnp.dot(wg, x_vmem[...].astype(jnp.bfloat16),
                  preferred_element_type=jnp.float32)                    # [Cout, HW] f32 acc
    o_ref[...] = acc.astype(o_ref.dtype)


def prepare_pointwise_weight(w_oi11):
    """One-time weight prep (call at parameter init, OUTSIDE the hot path).

    w_oi11: [Cout, Cin, 1, 1] f32 -> [Cout, Cin] bf16
    """
    Cout, Cin = w_oi11.shape[0], w_oi11.shape[1]
    return w_oi11.reshape(Cout, Cin).astype(jnp.bfloat16)


def se_pointwise_conv(s_nc11, x_nchw, w_mat, *, out_dtype=None):
    """sigmoid(s) * x followed by a 1x1 conv (no bias), native NCHW layout.

    s_nc11 : [N, Cin, 1, 1]   pre-sigmoid SE logits (x377)
    x_nchw : [N, Cin, H, W]   activations (x373); f32 or bf16
    w_mat  : [Cout, Cin]      pre-prepared bf16 weight (prepare_pointwise_weight)
    returns: [N, Cout, H, W]  (dtype = out_dtype, default x dtype)
    """
    N, Cin, H, W = x_nchw.shape
    Cout = w_mat.shape[0]
    assert N == 1, "reference module uses batch 1"
    HW = H * W
    if out_dtype is None:
        out_dtype = x_nchw.dtype

    # Free views (no transposes): NCHW with N=1 is already [Cin, H*W]-contiguous.
    x_mat = x_nchw.reshape(Cin, HW)       # [Cin, HW]
    s_row = s_nc11.reshape(1, Cin)        # [1, Cin]

    bytes_accessed = (x_mat.size * x_mat.dtype.itemsize          # x
                      + w_mat.size * w_mat.dtype.itemsize        # w (bf16)
                      + s_row.size * s_row.dtype.itemsize        # s
                      + Cout * HW * jnp.dtype(out_dtype).itemsize)  # out

    out_mat = pl.pallas_call(
        _se_pointwise_kernel,
        out_shape=jax.ShapeDtypeStruct((Cout, HW), out_dtype),
        in_specs=[
            pl.BlockSpec(memory_space=pltpu.MemorySpace.VMEM),   # w  (small)
            pl.BlockSpec(memory_space=pltpu.MemorySpace.VMEM),   # s  (tiny)
            pl.BlockSpec(memory_space=pl.ANY),                   # x  (HBM, manual DMA)
        ],
        out_specs=pl.BlockSpec(memory_space=pltpu.MemorySpace.VMEM),
        scratch_shapes=[
            pltpu.VMEM((Cin, HW), x_mat.dtype),                  # x landing buffer
            pltpu.SemaphoreType.DMA,                             # x copy semaphore
        ],
        cost_estimate=pl.CostEstimate(
            flops=2 * HW * Cin * Cout,
            transcendentals=Cin,
            bytes_accessed=bytes_accessed,
        ),
    )(w_mat, s_row, x_mat)

    # Free reshape back to NCHW.
    return out_mat.reshape(N, Cout, H, W)


if __name__ == "__main__":
    key = jax.random.PRNGKey(0)
    k1, k2, k3 = jax.random.split(key, 3)

    # Shapes fixed by the module's Conv2d(960, 160, 1x1) and its inputs.
    N, Cin, Cout, Hs, Ws = 1, 960, 160, 14, 14

    x373 = jax.random.normal(k1, (N, Cin, Hs, Ws), dtype=jnp.float32)
    x377 = jax.random.normal(k2, (N, Cin, 1, 1), dtype=jnp.float32)
    # deterministic Conv2d weight init (kaiming-uniform-like bound)
    bound = 1.0 / jnp.sqrt(jnp.float32(Cin))
    w = jax.random.uniform(k3, (Cout, Cin, 1, 1), dtype=jnp.float32,
                           minval=-bound, maxval=bound)

    # One-time weight prep (outside the hot path).
    w_bf16 = prepare_pointwise_weight(w)
    jax.block_until_ready(w_bf16)

    out = se_pointwise_conv(x377, x373, w_bf16)
    jax.block_until_ready(out)

    # Pure-JAX f32 reference; tolerance loosened for bf16 MXU operands (f32 accumulation).
    ref = jnp.einsum(
        "oc,nchw->nohw",
        w.reshape(Cout, Cin),
        jax.nn.sigmoid(x377) * x373,
    )
    assert out.shape == (N, Cout, Hs, Ws)
    assert jnp.allclose(out, ref, atol=2e-2, rtol=2e-2)

    print("KERNEL_OK")
</pallas_src>

<mosaic_0001>
module attributes {stable_mosaic.version = 11 : i64} {
  func.func @_se_pointwise_kernel(%arg0: memref<160x960xbf16, #tpu.memory_space<vmem>>, %arg1: memref<1x960xf32, #tpu.memory_space<vmem>>, %arg2: memref<960x196xf32, #tpu.memory_space<any>>, %arg3: memref<160x196xf32, #tpu.memory_space<vmem>>, %arg4: memref<960x196xf32, #tpu.memory_space<vmem>>, %arg5: memref<!tpu.dma_semaphore, #tpu.memory_space<semaphore_mem>>) attributes {dimension_semantics = [], scalar_prefetch = 0 : i64, scratch_operands = 2 : i64, tpu.core_type = #tpu.core_type<tc>} {
    tpu.enqueue_dma source(%arg2 : memref<960x196xf32, #tpu.memory_space<any>>) target(%arg4 : memref<960x196xf32, #tpu.memory_space<vmem>>) target_semaphore(%arg5 : memref<!tpu.dma_semaphore, #tpu.memory_space<semaphore_mem>>)
    %c0 = arith.constant 0 : index
    %c0_0 = arith.constant 0 : index
    %0 = vector.load %arg1[%c0, %c0_0] : memref<1x960xf32, #tpu.memory_space<vmem>>, vector<1x960xf32>
    %1 = arith.negf %0 : vector<1x960xf32>
    %2 = math.exp %1 : vector<1x960xf32>
    %cst = arith.constant 1.000000e+00 : f32
    %3 = vector.broadcast %cst : f32 to vector<1x960xf32>
    %4 = arith.addf %3, %2 : vector<1x960xf32>
    %5 = arith.divf %3, %4 : vector<1x960xf32>
    %c0_1 = arith.constant 0 : index
    %c0_2 = arith.constant 0 : index
    %6 = vector.load %arg0[%c0_1, %c0_2] : memref<160x960xbf16, #tpu.memory_space<vmem>>, vector<160x960xbf16>
    %7 = arith.extf %6 : vector<160x960xbf16> to vector<160x960xf32>
    %8 = vector.broadcast %5 : vector<1x960xf32> to vector<160x960xf32>
    %9 = arith.mulf %7, %8 : vector<160x960xf32>
    %10 = arith.truncf %9 : vector<160x960xf32> to vector<160x960xbf16>
    tpu.wait_dma2 semaphore(%arg5 : memref<!tpu.dma_semaphore, #tpu.memory_space<semaphore_mem>>) src(%arg2 : memref<960x196xf32, #tpu.memory_space<any>>) dst(%arg4 : memref<960x196xf32, #tpu.memory_space<vmem>>)
    %c0_3 = arith.constant 0 : index
    %c0_4 = arith.constant 0 : index
    %11 = vector.load %arg4[%c0_3, %c0_4] : memref<960x196xf32, #tpu.memory_space<vmem>>, vector<960x196xf32>
    %12 = arith.truncf %11 : vector<960x196xf32> to vector<960x196xbf16>
    %cst_5 = arith.constant dense<0.000000e+00> : vector<160x196xf32>
    %13 = tpu.matmul %10, %12, %cst_5 {dimension_numbers = #tpu.dot_dimension_numbers<[1], [0], [0], [1], [0, 0, 1, 1], [], []>} : vector<160x960xbf16>, vector<960x196xbf16>, vector<160x196xf32> -> vector<160x196xf32>
    %c0_6 = arith.constant 0 : index
    %c0_7 = arith.constant 0 : index
    %14 = vector.load %arg3[%c0_6, %c0_7] : memref<160x196xf32, #tpu.memory_space<vmem>>, vector<160x196xf32>
    tpu.vector_store %arg3[%c0_6, %c0_7], %13 {strides = array<i32>} : memref<160x196xf32, #tpu.memory_space<vmem>>, vector<160x196xf32>,
    return
  }
}

</mosaic_0001>

<llo_original>
// kernel: tpu_custom_call.1
$region0: #{tpu_custom_call.1}
  #allocation0 [shape = 'u32[]', space=smem, size = 0x4, offset = 0x4, fixed_abs, tag = 'smem constant byte address 0x4 - core index']
  #allocation1 [shape = 'u32[144,128]{1,0:T(1,128)}', space=vmem, size = 0x12000, scoped, tag = 'internal scratch']
  #allocation2 [shape = 'f32[960,196]{1,0:T(8,128)}', space=vmem, size = 0xf0000, scoped, tag = 'scratch operand']
  #allocation3 [shape = 's32[1]{0}', space=sflag, size = 0x4, scoped, tag = 'scratch operand']
  #allocation6 [shape = 's32[]', space=sflag, size = 0x4, offset = 0, fixed_abs, tag = 'sflag constant byte address 0x0 - dummy sync flag']
  %s0 = inlined_call_operand.vmem [shape: bf16[160,960], index: 0, kind: input, shape index: {}]
  %s1 = inlined_call_operand.vmem [shape: f32[1,960], index: 1, kind: input, shape index: {}]
  %s2 = inlined_call_operand.vmem [shape: f32[960,196], index: 2, kind: input, shape index: {}]
  %s3 = inlined_call_operand.hbm [shape: f32[160,196], index: 3, kind: output, shape index: {}]
  %s4 = sld [smem:[#allocation0]]
  $region52: #{tpu_custom_call.1} parent=0
    _
  %s6 = ssub.s32 1, %s4
  %s7 = scalar_select 0, %s6, %s4
  $region1: #{tpu_custom_call.1} parent=0
    #allocation4 [shape = 'u8[163840]{0}', space=vmem, size = 0x28000, scoped, tag = 'output window, operand 0, single buffered']
    #allocation5 [shape = 's32[1]{0}', space=sflag, size = 0x4, scoped, tag = 'scoped memory for tpu_custom_call.1']
    %8 = vsyncpa [#allocation5], 0
    // Predicated region
    $region2: #{tpu_custom_call.1} parent=1 // pred_check
      _
    $region3: #{tpu_custom_call.1} parent=1 // pred_check_branch
      %10 = sbr.rel (0) target = $region5
    $region4: #{tpu_custom_call.1} parent=1 // pred_region
      _
    $region5: #{tpu_custom_call.1} parent=1 // pred_fallthru
      _
    // Predicated region
    $region6: #{tpu_custom_call.1} parent=1 // pred_check
      _
    $region7: #{tpu_custom_call.1} parent=1 // pred_check_branch
      %12 = sbr.rel (0) target = $region9
    $region8: #{tpu_custom_call.1} parent=1 // pred_region
      _
    $region9: #{tpu_custom_call.1} parent=1 // pred_fallthru
      _
    %p15 = scmp.lt.u32.totalorder 1920, 8
    %p16 = pneg %p15
    // Predicated region
    $region10: #{tpu_custom_call.1} parent=1 // pred_check
      _
    $region11: #{tpu_custom_call.1} parent=1 // pred_check_branch
      %18 = sbr.rel (%p15) target = $region13
    $region12: #{tpu_custom_call.1} parent=1 // pred_region
      %s33 = sand.u32 1920, 7
      %p34 = scmp.eq.s32.totalorder %s33, 0
      // Predicated region
      $region25: #{tpu_custom_call.1} parent=12 // pred_check
        %p35 = pneg %p34
      $region26: #{tpu_custom_call.1} parent=12 // pred_check_branch
        %37 = sbr.rel (%p35) target = $region28
      $region27: #{tpu_custom_call.1} parent=12 // pred_region
        loop: start=0, step=1, limit=1
        $region29: #{tpu_custom_call.1} parent=27 // loop_pre_header
          _
        $region30: #{tpu_custom_call.1} parent=27 // loop_header
          %s39 = sphi 0, %s43
          %p40 = scmp.ge.s32.totalorder %s39, 1
          %s44 = sphi %s2, %s2
          %s45 = sphi [#allocation2], [#allocation2]
        $region31: #{tpu_custom_call.1} parent=27 // loop_header_branch
          %42 = sbr.rel (%p40) target = $region35
        $region32: #{tpu_custom_call.1} parent=27 // loop_body
          %v46 = vld [vmem:[%s44] sm:$0xff]
          %47 = vst [vmem:[%s45] sm:$0xff] %v46
          %v48 = vld [vmem:[%s44 + $0x8] sm:$0xff]
          %49 = vst [vmem:[%s45 + $0x8] sm:$0xff] %v48
          %v50 = vld [vmem:[%s44 + $0x10] sm:$0xff]
          %51 = vst [vmem:[%s45 + $0x10] sm:$0xff] %v50
          %v52 = vld [vmem:[%s44 + $0x18] sm:$0xff]
          %53 = vst [vmem:[%s45 + $0x18] sm:$0xff] %v52
          %v54 = vld [vmem:[%s44 + $0x20] sm:$0xff]
          %55 = vst [vmem:[%s45 + $0x20] sm:$0xff] %v54
          %v56 = vld [vmem:[%s44 + $0x28] sm:$0xff]
          %57 = vst [vmem:[%s45 + $0x28] sm:$0xff] %v56
          %v58 = vld [vmem:[%s44 + $0x30] sm:$0xff]
          %59 = vst [vmem:[%s45 + $0x30] sm:$0xff] %v58
          %v60 = vld [vmem:[%s44 + $0x38] sm:$0xff]
          %61 = vst [vmem:[%s45 + $0x38] sm:$0xff] %v60
          %v62 = vld [vmem:[%s44 + $0x40] sm:$0xff]
          %63 = vst [vmem:[%s45 + $0x40] sm:$0xff] %v62
          %v64 = vld [vmem:[%s44 + $0x48] sm:$0xff]
          %65 = vst [vmem:[%s45 + $0x48] sm:$0xff] %v64
          %v66 = vld [vmem:[%s44 + $0x50] sm:$0xff]
          %67 = vst [vmem:[%s45 + $0x50] sm:$0xff] %v66
          %v68 = vld [vmem:[%s44 + $0x58] sm:$0xff]
          %69 = vst [vmem:[%s45 + $0x58] sm:$0xff] %v68
          %v70 = vld [vmem:[%s44 + $0x60] sm:$0xff]
          %71 = vst [vmem:[%s45 + $0x60] sm:$0xff] %v70
          %v72 = vld [vmem:[%s44 + $0x68] sm:$0xff]
          %73 = vst [vmem:[%s45 + $0x68] sm:$0xff] %v72
          %v74 = vld [vmem:[%s44 + $0x70] sm:$0xff]
          %75 = vst [vmem:[%s45 + $0x70] sm:$0xff] %v74
          %v76 = vld [vmem:[%s44 + $0x78] sm:$0xff]
          %77 = vst [vmem:[%s45 + $0x78] sm:$0xff] %v76
          %v78 = vld [vmem:[%s44 + $0x80] sm:$0xff]
          %79 = vst [vmem:[%s45 + $0x80] sm:$0xff] %v78
          %v80 = vld [vmem:[%s44 + $0x88] sm:$0xff]
          %81 = vst [vmem:[%s45 + $0x88] sm:$0xff] %v80
          %v82 = vld [vmem:[%s44 + $0x90] sm:$0xff]
          %83 = vst [vmem:[%s45 + $0x90] sm:$0xff] %v82
          %v84 = vld [vmem:[%s44 + $0x98] sm:$0xff]
          %85 = vst [vmem:[%s45 + $0x98] sm:$0xff] %v84
          %v86 = vld [vmem:[%s44 + $0xa0] sm:$0xff]
          %87 = vst [vmem:[%s45 + $0xa0] sm:$0xff] %v86
          %v88 = vld [vmem:[%s44 + $0xa8] sm:$0xff]
          %89 = vst [vmem:[%s45 + $0xa8] sm:$0xff] %v88
          %v90 = vld [vmem:[%s44 + $0xb0] sm:$0xff]
          %91 = vst [vmem:[%s45 + $0xb0] sm:$0xff] %v90
          %v92 = vld [vmem:[%s44 + $0xb8] sm:$0xff]
          %93 = vst [vmem:[%s45 + $0xb8] sm:$0xff] %v92
          %v94 = vld [vmem:[%s44 + $0xc0] sm:$0xff]
          %95 = vst [vmem:[%s45 + $0xc0] sm:$0xff] %v94
          %v96 = vld [vmem:[%s44 + $0xc8] sm:$0xff]
          %97 = vst [vmem:[%s45 + $0xc8] sm:$0xff] %v96
          %v98 = vld [vmem:[%s44 + $0xd0] sm:$0xff]
          %99 = vst [vmem:[%s45 + $0xd0] sm:$0xff] %v98
          %v100 = vld [vmem:[%s44 + $0xd8] sm:$0xff]
          %101 = vst [vmem:[%s45 + $0xd8] sm:$0xff] %v100
          %v102 = vld [vmem:[%s44 + $0xe0] sm:$0xff]
          %103 = vst [vmem:[%s45 + $0xe0] sm:$0xff] %v102
          %v104 = vld [vmem:[%s44 + $0xe8] sm:$0xff]
          %105 = vst [vmem:[%s45 + $0xe8] sm:$0xff] %v104
          %v106 = vld [vmem:[%s44 + $0xf0] sm:$0xff]
          %107 = vst [vmem:[%s45 + $0xf0] sm:$0xff] %v106
          %v108 = vld [vmem:[%s44 + $0xf8] sm:$0xff]
          %109 = vst [vmem:[%s45 + $0xf8] sm:$0xff] %v108
          %v110 = vld [vmem:[%s44 + $0x100] sm:$0xff]
          %111 = vst [vmem:[%s45 + $0x100] sm:$0xff] %v110
          %v112 = vld [vmem:[%s44 + $0x108] sm:$0xff]
          %113 = vst [vmem:[%s45 + $0x108] sm:$0xff] %v112
          %v114 = vld [vmem:[%s44 + $0x110] sm:$0xff]
          %115 = vst [vmem:[%s45 + $0x110] sm:$0xff] %v114
          %v116 = vld [vmem:[%s44 + $0x118] sm:$0xff]
          %117 = vst [vmem:[%s45 + $0x118] sm:$0xff] %v116
          %v118 = vld [vmem:[%s44 + $0x120] sm:$0xff]
          %119 = vst [vmem:[%s45 + $0x120] sm:$0xff] %v118
          %v120 = vld [vmem:[%s44 + $0x128] sm:$0xff]
          %121 = vst [vmem:[%s45 + $0x128] sm:$0xff] %v120
          %v122 = vld [vmem:[%s44 + $0x130] sm:$0xff]
          %123 = vst [vmem:[%s45 + $0x130] sm:$0xff] %v122
          %v124 = vld [vmem:[%s44 + $0x138] sm:$0xff]
          %125 = vst [vmem:[%s45 + $0x138] sm:$0xff] %v124
          %v126 = vld [vmem:[%s44 + $0x140] sm:$0xff]
          %127 = vst [vmem:[%s45 + $0x140] sm:$0xff] %v126
          %v128 = vld [vmem:[%s44 + $0x148] sm:$0xff]
          %129 = vst [vmem:[%s45 + $0x148] sm:$0xff] %v128
          %v130 = vld [vmem:[%s44 + $0x150] sm:$0xff]
          %131 = vst [vmem:[%s45 + $0x150] sm:$0xff] %v130
          %v132 = vld [vmem:[%s44 + $0x158] sm:$0xff]
          %133 = vst [vmem:[%s45 + $0x158] sm:$0xff] %v132
          %v134 = vld [vmem:[%s44 + $0x160] sm:$0xff]
          %135 = vst [vmem:[%s45 + $0x160] sm:$0xff] %v134
          %v136 = vld [vmem:[%s44 + $0x168] sm:$0xff]
          %137 = vst [vmem:[%s45 + $0x168] sm:$0xff] %v136
          %v138 = vld [vmem:[%s44 + $0x170] sm:$0xff]
          %139 = vst [vmem:[%s45 + $0x170] sm:$0xff] %v138
          %v140 = vld [vmem:[%s44 + $0x178] sm:$0xff]
          %141 = vst [vmem:[%s45 + $0x178] sm:$0xff] %v140
          %v142 = vld [vmem:[%s44 + $0x180] sm:$0xff]
          %143 = vst [vmem:[%s45 + $0x180] sm:$0xff] %v142
          %v144 = vld [vmem:[%s44 + $0x188] sm:$0xff]
          %145 = vst [vmem:[%s45 + $0x188] sm:$0xff] %v144
          %v146 = vld [vmem:[%s44 + $0x190] sm:$0xff]
          %147 = vst [vmem:[%s45 + $0x190] sm:$0xff] %v146
          %v148 = vld [vmem:[%s44 + $0x198] sm:$0xff]
          %149 = vst [vmem:[%s45 + $0x198] sm:$0xff] %v148
          %v150 = vld [vmem:[%s44 + $0x1a0] sm:$0xff]
          %151 = vst [vmem:[%s45 + $0x1a0] sm:$0xff] %v150
          %v152 = vld [vmem:[%s44 + $0x1a8] sm:$0xff]
          %153 = vst [vmem:[%s45 + $0x1a8] sm:$0xff] %v152
          %v154 = vld [vmem:[%s44 + $0x1b0] sm:$0xff]
          %155 = vst [vmem:[%s45 + $0x1b0] sm:$0xff] %v154
          %v156 = vld [vmem:[%s44 + $0x1b8] sm:$0xff]
          %157 = vst [vmem:[%s45 + $0x1b8] sm:$0xff] %v156
          %v158 = vld [vmem:[%s44 + $0x1c0] sm:$0xff]
          %159 = vst [vmem:[%s45 + $0x1c0] sm:$0xff] %v158
          %v160 = vld [vmem:[%s44 + $0x1c8] sm:$0xff]
          %161 = vst [vmem:[%s45 + $0x1c8] sm:$0xff] %v160
          %v162 = vld [vmem:[%s44 + $0x1d0] sm:$0xff]
          %163 = vst [vmem:[%s45 + $0x1d0] sm:$0xff] %v162
          %v164 = vld [vmem:[%s44 + $0x1d8] sm:$0xff]
          %165 = vst [vmem:[%s45 + $0x1d8] sm:$0xff] %v164
          %v166 = vld [vmem:[%s44 + $0x1e0] sm:$0xff]
          %167 = vst [vmem:[%s45 + $0x1e0] sm:$0xff] %v166
          %v168 = vld [vmem:[%s44 + $0x1e8] sm:$0xff]
          %169 = vst [vmem:[%s45 + $0x1e8] sm:$0xff] %v168
          %v170 = vld [vmem:[%s44 + $0x1f0] sm:$0xff]
          %171 = vst [vmem:[%s45 + $0x1f0] sm:$0xff] %v170
          %v172 = vld [vmem:[%s44 + $0x1f8] sm:$0xff]
          %173 = vst [vmem:[%s45 + $0x1f8] sm:$0xff] %v172
          %v174 = vld [vmem:[%s44 + $0x200] sm:$0xff]
          %175 = vst [vmem:[%s45 + $0x200] sm:$0xff] %v174
          %v176 = vld [vmem:[%s44 + $0x208] sm:$0xff]
          %177 = vst [vmem:[%s45 + $0x208] sm:$0xff] %v176
          %v178 = vld [vmem:[%s44 + $0x210] sm:$0xff]
          %179 = vst [vmem:[%s45 + $0x210] sm:$0xff] %v178
          %v180 = vld [vmem:[%s44 + $0x218] sm:$0xff]
          %181 = vst [vmem:[%s45 + $0x218] sm:$0xff] %v180
          %v182 = vld [vmem:[%s44 + $0x220] sm:$0xff]
          %183 = vst [vmem:[%s45 + $0x220] sm:$0xff] %v182
          %v184 = vld [vmem:[%s44 + $0x228] sm:$0xff]
          %185 = vst [vmem:[%s45 + $0x228] sm:$0xff] %v184
          %v186 = vld [vmem:[%s44 + $0x230] sm:$0xff]
          %187 = vst [vmem:[%s45 + $0x230] sm:$0xff] %v186
          %v188 = vld [vmem:[%s44 + $0x238] sm:$0xff]
          %189 = vst [vmem:[%s45 + $0x238] sm:$0xff] %v188
          %v190 = vld [vmem:[%s44 + $0x240] sm:$0xff]
          %191 = vst [vmem:[%s45 + $0x240] sm:$0xff] %v190
          %v192 = vld [vmem:[%s44 + $0x248] sm:$0xff]
          %193 = vst [vmem:[%s45 + $0x248] sm:$0xff] %v192
          %v194 = vld [vmem:[%s44 + $0x250] sm:$0xff]
          %195 = vst [vmem:[%s45 + $0x250] sm:$0xff] %v194
          %v196 = vld [vmem:[%s44 + $0x258] sm:$0xff]
          %197 = vst [vmem:[%s45 + $0x258] sm:$0xff] %v196
          %v198 = vld [vmem:[%s44 + $0x260] sm:$0xff]
          %199 = vst [vmem:[%s45 + $0x260] sm:$0xff] %v198
          %v200 = vld [vmem:[%s44 + $0x268] sm:$0xff]
          %201 = vst [vmem:[%s45 + $0x268] sm:$0xff] %v200
          %v202 = vld [vmem:[%s44 + $0x270] sm:$0xff]
          %203 = vst [vmem:[%s45 + $0x270] sm:$0xff] %v202
          %v204 = vld [vmem:[%s44 + $0x278] sm:$0xff]
          %205 = vst [vmem:[%s45 + $0x278] sm:$0xff] %v204
          %v206 = vld [vmem:[%s44 + $0x280] sm:$0xff]
          %207 = vst [vmem:[%s45 + $0x280] sm:$0xff] %v206
          %v208 = vld [vmem:[%s44 + $0x288] sm:$0xff]
          %209 = vst [vmem:[%s45 + $0x288] sm:$0xff] %v208
          %v210 = vld [vmem:[%s44 + $0x290] sm:$0xff]
          %211 = vst [vmem:[%s45 + $0x290] sm:$0xff] %v210
          %v212 = vld [vmem:[%s44 + $0x298] sm:$0xff]
          %213 = vst [vmem:[%s45 + $0x298] sm:$0xff] %v212
          %v214 = vld [vmem:[%s44 + $0x2a0] sm:$0xff]
          %215 = vst [vmem:[%s45 + $0x2a0] sm:$0xff] %v214
          %v216 = vld [vmem:[%s44 + $0x2a8] sm:$0xff]
          %217 = vst [vmem:[%s45 + $0x2a8] sm:$0xff] %v216
          %v218 = vld [vmem:[%s44 + $0x2b0] sm:$0xff]
          %219 = vst [vmem:[%s45 + $0x2b0] sm:$0xff] %v218
          %v220 = vld [vmem:[%s44 + $0x2b8] sm:$0xff]
          %221 = vst [vmem:[%s45 + $0x2b8] sm:$0xff] %v220
          %v222 = vld [vmem:[%s44 + $0x2c0] sm:$0xff]
          %223 = vst [vmem:[%s45 + $0x2c0] sm:$0xff] %v222
          %v224 = vld [vmem:[%s44 + $0x2c8] sm:$0xff]
          %225 = vst [vmem:[%s45 + $0x2c8] sm:$0xff] %v224
          %v226 = vld [vmem:[%s44 + $0x2d0] sm:$0xff]
          %227 = vst [vmem:[%s45 + $0x2d0] sm:$0xff] %v226
          %v228 = vld [vmem:[%s44 + $0x2d8] sm:$0xff]
          %229 = vst [vmem:[%s45 + $0x2d8] sm:$0xff] %v228
          %v230 = vld [vmem:[%s44 + $0x2e0] sm:$0xff]
          %231 = vst [vmem:[%s45 + $0x2e0] sm:$0xff] %v230
          %v232 = vld [vmem:[%s44 + $0x2e8] sm:$0xff]
          %233 = vst [vmem:[%s45 + $0x2e8] sm:$0xff] %v232
          %v234 = vld [vmem:[%s44 + $0x2f0] sm:$0xff]
          %235 = vst [vmem:[%s45 + $0x2f0] sm:$0xff] %v234
          %v236 = vld [vmem:[%s44 + $0x2f8] sm:$0xff]
          %237 = vst [vmem:[%s45 + $0x2f8] sm:$0xff] %v236
          %v238 = vld [vmem:[%s44 + $0x300] sm:$0xff]
          %239 = vst [vmem:[%s45 + $0x300] sm:$0xff] %v238
          %v240 = vld [vmem:[%s44 + $0x308] sm:$0xff]
          %241 = vst [vmem:[%s45 + $0x308] sm:$0xff] %v240
          %v242 = vld [vmem:[%s44 + $0x310] sm:$0xff]
          %243 = vst [vmem:[%s45 + $0x310] sm:$0xff] %v242
          %v244 = vld [vmem:[%s44 + $0x318] sm:$0xff]
          %245 = vst [vmem:[%s45 + $0x318] sm:$0xff] %v244
          %v246 = vld [vmem:[%s44 + $0x320] sm:$0xff]
          %247 = vst [vmem:[%s45 + $0x320] sm:$0xff] %v246
          %v248 = vld [vmem:[%s44 + $0x328] sm:$0xff]
          %249 = vst [vmem:[%s45 + $0x328] sm:$0xff] %v248
          %v250 = vld [vmem:[%s44 + $0x330] sm:$0xff]
          %251 = vst [vmem:[%s45 + $0x330] sm:$0xff] %v250
          %v252 = vld [vmem:[%s44 + $0x338] sm:$0xff]
          %253 = vst [vmem:[%s45 + $0x338] sm:$0xff] %v252
          %v254 = vld [vmem:[%s44 + $0x340] sm:$0xff]
          %255 = vst [vmem:[%s45 + $0x340] sm:$0xff] %v254
          %v256 = vld [vmem:[%s44 + $0x348] sm:$0xff]
          %257 = vst [vmem:[%s45 + $0x348] sm:$0xff] %v256
          %v258 = vld [vmem:[%s44 + $0x350] sm:$0xff]
          %259 = vst [vmem:[%s45 + $0x350] sm:$0xff] %v258
          %v260 = vld [vmem:[%s44 + $0x358] sm:$0xff]
          %261 = vst [vmem:[%s45 + $0x358] sm:$0xff] %v260
          %v262 = vld [vmem:[%s44 + $0x360] sm:$0xff]
          %263 = vst [vmem:[%s45 + $0x360] sm:$0xff] %v262
          %v264 = vld [vmem:[%s44 + $0x368] sm:$0xff]
          %265 = vst [vmem:[%s45 + $0x368] sm:$0xff] %v264
          %v266 = vld [vmem:[%s44 + $0x370] sm:$0xff]
          %267 = vst [vmem:[%s45 + $0x370] sm:$0xff] %v266
          %v268 = vld [vmem:[%s44 + $0x378] sm:$0xff]
          %269 = vst [vmem:[%s45 + $0x378] sm:$0xff] %v268
          %v270 = vld [vmem:[%s44 + $0x380] sm:$0xff]
          %271 = vst [vmem:[%s45 + $0x380] sm:$0xff] %v270
          %v272 = vld [vmem:[%s44 + $0x388] sm:$0xff]
          %273 = vst [vmem:[%s45 + $0x388] sm:$0xff] %v272
          %v274 = vld [vmem:[%s44 + $0x390] sm:$0xff]
          %275 = vst [vmem:[%s45 + $0x390] sm:$0xff] %v274
          %v276 = vld [vmem:[%s44 + $0x398] sm:$0xff]
          %277 = vst [vmem:[%s45 + $0x398] sm:$0xff] %v276
          %v278 = vld [vmem:[%s44 + $0x3a0] sm:$0xff]
          %279 = vst [vmem:[%s45 + $0x3a0] sm:$0xff] %v278
          %v280 = vld [vmem:[%s44 + $0x3a8] sm:$0xff]
          %281 = vst [vmem:[%s45 + $0x3a8] sm:$0xff] %v280
          %v282 = vld [vmem:[%s44 + $0x3b0] sm:$0xff]
          %283 = vst [vmem:[%s45 + $0x3b0] sm:$0xff] %v282
          %v284 = vld [vmem:[%s44 + $0x3b8] sm:$0xff]
          %285 = vst [vmem:[%s45 + $0x3b8] sm:$0xff] %v284
          %v286 = vld [vmem:[%s44 + $0x3c0] sm:$0xff]
          %287 = vst [vmem:[%s45 + $0x3c0] sm:$0xff] %v286
          %v288 = vld [vmem:[%s44 + $0x3c8] sm:$0xff]
          %289 = vst [vmem:[%s45 + $0x3c8] sm:$0xff] %v288
          %v290 = vld [vmem:[%s44 + $0x3d0] sm:$0xff]
          %291 = vst [vmem:[%s45 + $0x3d0] sm:$0xff] %v290
          %v292 = vld [vmem:[%s44 + $0x3d8] sm:$0xff]
          %293 = vst [vmem:[%s45 + $0x3d8] sm:$0xff] %v292
          %v294 = vld [vmem:[%s44 + $0x3e0] sm:$0xff]
          %295 = vst [vmem:[%s45 + $0x3e0] sm:$0xff] %v294
          %v296 = vld [vmem:[%s44 + $0x3e8] sm:$0xff]
          %297 = vst [vmem:[%s45 + $0x3e8] sm:$0xff] %v296
          %v298 = vld [vmem:[%s44 + $0x3f0] sm:$0xff]
          %299 = vst [vmem:[%s45 + $0x3f0] sm:$0xff] %v298
          %v300 = vld [vmem:[%s44 + $0x3f8] sm:$0xff]
          %301 = vst [vmem:[%s45 + $0x3f8] sm:$0xff] %v300
          %v302 = vld [vmem:[%s44 + $0x400] sm:$0xff]
          %303 = vst [vmem:[%s45 + $0x400] sm:$0xff] %v302
          %v304 = vld [vmem:[%s44 + $0x408] sm:$0xff]
          %305 = vst [vmem:[%s45 + $0x408] sm:$0xff] %v304
          %v306 = vld [vmem:[%s44 + $0x410] sm:$0xff]
          %307 = vst [vmem:[%s45 + $0x410] sm:$0xff] %v306
          %v308 = vld [vmem:[%s44 + $0x418] sm:$0xff]
          %309 = vst [vmem:[%s45 + $0x418] sm:$0xff] %v308
          %v310 = vld [vmem:[%s44 + $0x420] sm:$0xff]
          %311 = vst [vmem:[%s45 + $0x420] sm:$0xff] %v310
          %v312 = vld [vmem:[%s44 + $0x428] sm:$0xff]
          %313 = vst [vmem:[%s45 + $0x428] sm:$0xff] %v312
          %v314 = vld [vmem:[%s44 + $0x430] sm:$0xff]
          %315 = vst [vmem:[%s45 + $0x430] sm:$0xff] %v314
          %v316 = vld [vmem:[%s44 + $0x438] sm:$0xff]
          %317 = vst [vmem:[%s45 + $0x438] sm:$0xff] %v316
          %v318 = vld [vmem:[%s44 + $0x440] sm:$0xff]
          %319 = vst [vmem:[%s45 + $0x440] sm:$0xff] %v318
          %v320 = vld [vmem:[%s44 + $0x448] sm:$0xff]
          %321 = vst [vmem:[%s45 + $0x448] sm:$0xff] %v320
          %v322 = vld [vmem:[%s44 + $0x450] sm:$0xff]
          %323 = vst [vmem:[%s45 + $0x450] sm:$0xff] %v322
          %v324 = vld [vmem:[%s44 + $0x458] sm:$0xff]
          %325 = vst [vmem:[%s45 + $0x458] sm:$0xff] %v324
          %v326 = vld [vmem:[%s44 + $0x460] sm:$0xff]
          %327 = vst [vmem:[%s45 + $0x460] sm:$0xff] %v326
          %v328 = vld [vmem:[%s44 + $0x468] sm:$0xff]
          %329 = vst [vmem:[%s45 + $0x468] sm:$0xff] %v328
          %v330 = vld [vmem:[%s44 + $0x470] sm:$0xff]
          %331 = vst [vmem:[%s45 + $0x470] sm:$0xff] %v330
          %v332 = vld [vmem:[%s44 + $0x478] sm:$0xff]
          %333 = vst [vmem:[%s45 + $0x478] sm:$0xff] %v332
          %v334 = vld [vmem:[%s44 + $0x480] sm:$0xff]
          %335 = vst [vmem:[%s45 + $0x480] sm:$0xff] %v334
          %v336 = vld [vmem:[%s44 + $0x488] sm:$0xff]
          %337 = vst [vmem:[%s45 + $0x488] sm:$0xff] %v336
          %v338 = vld [vmem:[%s44 + $0x490] sm:$0xff]
          %339 = vst [vmem:[%s45 + $0x490] sm:$0xff] %v338
          %v340 = vld [vmem:[%s44 + $0x498] sm:$0xff]
          %341 = vst [vmem:[%s45 + $0x498] sm:$0xff] %v340
          %v342 = vld [vmem:[%s44 + $0x4a0] sm:$0xff]
          %343 = vst [vmem:[%s45 + $0x4a0] sm:$0xff] %v342
          %v344 = vld [vmem:[%s44 + $0x4a8] sm:$0xff]
          %345 = vst [vmem:[%s45 + $0x4a8] sm:$0xff] %v344
          %v346 = vld [vmem:[%s44 + $0x4b0] sm:$0xff]
          %347 = vst [vmem:[%s45 + $0x4b0] sm:$0xff] %v346
          %v348 = vld [vmem:[%s44 + $0x4b8] sm:$0xff]
          %349 = vst [vmem:[%s45 + $0x4b8] sm:$0xff] %v348
          %v350 = vld [vmem:[%s44 + $0x4c0] sm:$0xff]
          %351 = vst [vmem:[%s45 + $0x4c0] sm:$0xff] %v350
          %v352 = vld [vmem:[%s44 + $0x4c8] sm:$0xff]
          %353 = vst [vmem:[%s45 + $0x4c8] sm:$0xff] %v352
          %v354 = vld [vmem:[%s44 + $0x4d0] sm:$0xff]
          %355 = vst [vmem:[%s45 + $0x4d0] sm:$0xff] %v354
          %v356 = vld [vmem:[%s44 + $0x4d8] sm:$0xff]
          %357 = vst [vmem:[%s45 + $0x4d8] sm:$0xff] %v356
          %v358 = vld [vmem:[%s44 + $0x4e0] sm:$0xff]
          %359 = vst [vmem:[%s45 + $0x4e0] sm:$0xff] %v358
          %v360 = vld [vmem:[%s44 + $0x4e8] sm:$0xff]
          %361 = vst [vmem:[%s45 + $0x4e8] sm:$0xff] %v360
          %v362 = vld [vmem:[%s44 + $0x4f0] sm:$0xff]
          %363 = vst [vmem:[%s45 + $0x4f0] sm:$0xff] %v362
          %v364 = vld [vmem:[%s44 + $0x4f8] sm:$0xff]
          %365 = vst [vmem:[%s45 + $0x4f8] sm:$0xff] %v364
          %v366 = vld [vmem:[%s44 + $0x500] sm:$0xff]
          %367 = vst [vmem:[%s45 + $0x500] sm:$0xff] %v366
          %v368 = vld [vmem:[%s44 + $0x508] sm:$0xff]
          %369 = vst [vmem:[%s45 + $0x508] sm:$0xff] %v368
          %v370 = vld [vmem:[%s44 + $0x510] sm:$0xff]
          %371 = vst [vmem:[%s45 + $0x510] sm:$0xff] %v370
          %v372 = vld [vmem:[%s44 + $0x518] sm:$0xff]
          %373 = vst [vmem:[%s45 + $0x518] sm:$0xff] %v372
          %v374 = vld [vmem:[%s44 + $0x520] sm:$0xff]
          %375 = vst [vmem:[%s45 + $0x520] sm:$0xff] %v374
          %v376 = vld [vmem:[%s44 + $0x528] sm:$0xff]
          %377 = vst [vmem:[%s45 + $0x528] sm:$0xff] %v376
          %v378 = vld [vmem:[%s44 + $0x530] sm:$0xff]
          %379 = vst [vmem:[%s45 + $0x530] sm:$0xff] %v378
          %v380 = vld [vmem:[%s44 + $0x538] sm:$0xff]
          %381 = vst [vmem:[%s45 + $0x538] sm:$0xff] %v380
          %v382 = vld [vmem:[%s44 + $0x540] sm:$0xff]
          %383 = vst [vmem:[%s45 + $0x540] sm:$0xff] %v382
          %v384 = vld [vmem:[%s44 + $0x548] sm:$0xff]
          %385 = vst [vmem:[%s45 + $0x548] sm:$0xff] %v384
          %v386 = vld [vmem:[%s44 + $0x550] sm:$0xff]
          %387 = vst [vmem:[%s45 + $0x550] sm:$0xff] %v386
          %v388 = vld [vmem:[%s44 + $0x558] sm:$0xff]
          %389 = vst [vmem:[%s45 + $0x558] sm:$0xff] %v388
          %v390 = vld [vmem:[%s44 + $0x560] sm:$0xff]
          %391 = vst [vmem:[%s45 + $0x560] sm:$0xff] %v390
          %v392 = vld [vmem:[%s44 + $0x568] sm:$0xff]
          %393 = vst [vmem:[%s45 + $0x568] sm:$0xff] %v392
          %v394 = vld [vmem:[%s44 + $0x570] sm:$0xff]
          %395 = vst [vmem:[%s45 + $0x570] sm:$0xff] %v394
          %v396 = vld [vmem:[%s44 + $0x578] sm:$0xff]
          %397 = vst [vmem:[%s45 + $0x578] sm:$0xff] %v396
          %v398 = vld [vmem:[%s44 + $0x580] sm:$0xff]
          %399 = vst [vmem:[%s45 + $0x580] sm:$0xff] %v398
          %v400 = vld [vmem:[%s44 + $0x588] sm:$0xff]
          %401 = vst [vmem:[%s45 + $0x588] sm:$0xff] %v400
          %v402 = vld [vmem:[%s44 + $0x590] sm:$0xff]
          %403 = vst [vmem:[%s45 + $0x590] sm:$0xff] %v402
          %v404 = vld [vmem:[%s44 + $0x598] sm:$0xff]
          %405 = vst [vmem:[%s45 + $0x598] sm:$0xff] %v404
          %v406 = vld [vmem:[%s44 + $0x5a0] sm:$0xff]
          %407 = vst [vmem:[%s45 + $0x5a0] sm:$0xff] %v406
          %v408 = vld [vmem:[%s44 + $0x5a8] sm:$0xff]
          %409 = vst [vmem:[%s45 + $0x5a8] sm:$0xff] %v408
          %v410 = vld [vmem:[%s44 + $0x5b0] sm:$0xff]
          %411 = vst [vmem:[%s45 + $0x5b0] sm:$0xff] %v410
          %v412 = vld [vmem:[%s44 + $0x5b8] sm:$0xff]
          %413 = vst [vmem:[%s45 + $0x5b8] sm:$0xff] %v412
          %v414 = vld [vmem:[%s44 + $0x5c0] sm:$0xff]
          %415 = vst [vmem:[%s45 + $0x5c0] sm:$0xff] %v414
          %v416 = vld [vmem:[%s44 + $0x5c8] sm:$0xff]
          %417 = vst [vmem:[%s45 + $0x5c8] sm:$0xff] %v416
          %v418 = vld [vmem:[%s44 + $0x5d0] sm:$0xff]
          %419 = vst [vmem:[%s45 + $0x5d0] sm:$0xff] %v418
          %v420 = vld [vmem:[%s44 + $0x5d8] sm:$0xff]
          %421 = vst [vmem:[%s45 + $0x5d8] sm:$0xff] %v420
          %v422 = vld [vmem:[%s44 + $0x5e0] sm:$0xff]
          %423 = vst [vmem:[%s45 + $0x5e0] sm:$0xff] %v422
          %v424 = vld [vmem:[%s44 + $0x5e8] sm:$0xff]
          %425 = vst [vmem:[%s45 + $0x5e8] sm:$0xff] %v424
          %v426 = vld [vmem:[%s44 + $0x5f0] sm:$0xff]
          %427 = vst [vmem:[%s45 + $0x5f0] sm:$0xff] %v426
          %v428 = vld [vmem:[%s44 + $0x5f8] sm:$0xff]
          %429 = vst [vmem:[%s45 + $0x5f8] sm:$0xff] %v428
          %v430 = vld [vmem:[%s44 + $0x600] sm:$0xff]
          %431 = vst [vmem:[%s45 + $0x600] sm:$0xff] %v430
          %v432 = vld [vmem:[%s44 + $0x608] sm:$0xff]
          %433 = vst [vmem:[%s45 + $0x608] sm:$0xff] %v432
          %v434 = vld [vmem:[%s44 + $0x610] sm:$0xff]
          %435 = vst [vmem:[%s45 + $0x610] sm:$0xff] %v434
          %v436 = vld [vmem:[%s44 + $0x618] sm:$0xff]
          %437 = vst [vmem:[%s45 + $0x618] sm:$0xff] %v436
          %v438 = vld [vmem:[%s44 + $0x620] sm:$0xff]
          %439 = vst [vmem:[%s45 + $0x620] sm:$0xff] %v438
          %v440 = vld [vmem:[%s44 + $0x628] sm:$0xff]
          %441 = vst [vmem:[%s45 + $0x628] sm:$0xff] %v440
          %v442 = vld [vmem:[%s44 + $0x630] sm:$0xff]
          %443 = vst [vmem:[%s45 + $0x630] sm:$0xff] %v442
          %v444 = vld [vmem:[%s44 + $0x638] sm:$0xff]
          %445 = vst [vmem:[%s45 + $0x638] sm:$0xff] %v444
          %v446 = vld [vmem:[%s44 + $0x640] sm:$0xff]
          %447 = vst [vmem:[%s45 + $0x640] sm:$0xff] %v446
          %v448 = vld [vmem:[%s44 + $0x648] sm:$0xff]
          %449 = vst [vmem:[%s45 + $0x648] sm:$0xff] %v448
          %v450 = vld [vmem:[%s44 + $0x650] sm:$0xff]
          %451 = vst [vmem:[%s45 + $0x650] sm:$0xff] %v450
          %v452 = vld [vmem:[%s44 + $0x658] sm:$0xff]
          %453 = vst [vmem:[%s45 + $0x658] sm:$0xff] %v452
          %v454 = vld [vmem:[%s44 + $0x660] sm:$0xff]
          %455 = vst [vmem:[%s45 + $0x660] sm:$0xff] %v454
          %v456 = vld [vmem:[%s44 + $0x668] sm:$0xff]
          %457 = vst [vmem:[%s45 + $0x668] sm:$0xff] %v456
          %v458 = vld [vmem:[%s44 + $0x670] sm:$0xff]
          %459 = vst [vmem:[%s45 + $0x670] sm:$0xff] %v458
          %v460 = vld [vmem:[%s44 + $0x678] sm:$0xff]
          %461 = vst [vmem:[%s45 + $0x678] sm:$0xff] %v460
          %v462 = vld [vmem:[%s44 + $0x680] sm:$0xff]
          %463 = vst [vmem:[%s45 + $0x680] sm:$0xff] %v462
          %v464 = vld [vmem:[%s44 + $0x688] sm:$0xff]
          %465 = vst [vmem:[%s45 + $0x688] sm:$0xff] %v464
          %v466 = vld [vmem:[%s44 + $0x690] sm:$0xff]
          %467 = vst [vmem:[%s45 + $0x690] sm:$0xff] %v466
          %v468 = vld [vmem:[%s44 + $0x698] sm:$0xff]
          %469 = vst [vmem:[%s45 + $0x698] sm:$0xff] %v468
          %v470 = vld [vmem:[%s44 + $0x6a0] sm:$0xff]
          %471 = vst [vmem:[%s45 + $0x6a0] sm:$0xff] %v470
          %v472 = vld [vmem:[%s44 + $0x6a8] sm:$0xff]
          %473 = vst [vmem:[%s45 + $0x6a8] sm:$0xff] %v472
          %v474 = vld [vmem:[%s44 + $0x6b0] sm:$0xff]
          %475 = vst [vmem:[%s45 + $0x6b0] sm:$0xff] %v474
          %v476 = vld [vmem:[%s44 + $0x6b8] sm:$0xff]
          %477 = vst [vmem:[%s45 + $0x6b8] sm:$0xff] %v476
          %v478 = vld [vmem:[%s44 + $0x6c0] sm:$0xff]
          %479 = vst [vmem:[%s45 + $0x6c0] sm:$0xff] %v478
          %v480 = vld [vmem:[%s44 + $0x6c8] sm:$0xff]
          %481 = vst [vmem:[%s45 + $0x6c8] sm:$0xff] %v480
          %v482 = vld [vmem:[%s44 + $0x6d0] sm:$0xff]
          %483 = vst [vmem:[%s45 + $0x6d0] sm:$0xff] %v482
          %v484 = vld [vmem:[%s44 + $0x6d8] sm:$0xff]
          %485 = vst [vmem:[%s45 + $0x6d8] sm:$0xff] %v484
          %v486 = vld [vmem:[%s44 + $0x6e0] sm:$0xff]
          %487 = vst [vmem:[%s45 + $0x6e0] sm:$0xff] %v486
          %v488 = vld [vmem:[%s44 + $0x6e8] sm:$0xff]
          %489 = vst [vmem:[%s45 + $0x6e8] sm:$0xff] %v488
          %v490 = vld [vmem:[%s44 + $0x6f0] sm:$0xff]
          %491 = vst [vmem:[%s45 + $0x6f0] sm:$0xff] %v490
          %v492 = vld [vmem:[%s44 + $0x6f8] sm:$0xff]
          %493 = vst [vmem:[%s45 + $0x6f8] sm:$0xff] %v492
          %v494 = vld [vmem:[%s44 + $0x700] sm:$0xff]
          %495 = vst [vmem:[%s45 + $0x700] sm:$0xff] %v494
          %v496 = vld [vmem:[%s44 + $0x708] sm:$0xff]
          %497 = vst [vmem:[%s45 + $0x708] sm:$0xff] %v496
          %v498 = vld [vmem:[%s44 + $0x710] sm:$0xff]
          %499 = vst [vmem:[%s45 + $0x710] sm:$0xff] %v498
          %v500 = vld [vmem:[%s44 + $0x718] sm:$0xff]
          %501 = vst [vmem:[%s45 + $0x718] sm:$0xff] %v500
          %v502 = vld [vmem:[%s44 + $0x720] sm:$0xff]
          %503 = vst [vmem:[%s45 + $0x720] sm:$0xff] %v502
          %v504 = vld [vmem:[%s44 + $0x728] sm:$0xff]
          %505 = vst [vmem:[%s45 + $0x728] sm:$0xff] %v504
          %v506 = vld [vmem:[%s44 + $0x730] sm:$0xff]
          %507 = vst [vmem:[%s45 + $0x730] sm:$0xff] %v506
          %v508 = vld [vmem:[%s44 + $0x738] sm:$0xff]
          %509 = vst [vmem:[%s45 + $0x738] sm:$0xff] %v508
          %v510 = vld [vmem:[%s44 + $0x740] sm:$0xff]
          %511 = vst [vmem:[%s45 + $0x740] sm:$0xff] %v510
          %v512 = vld [vmem:[%s44 + $0x748] sm:$0xff]
          %513 = vst [vmem:[%s45 + $0x748] sm:$0xff] %v512
          %v514 = vld [vmem:[%s44 + $0x750] sm:$0xff]
          %515 = vst [vmem:[%s45 + $0x750] sm:$0xff] %v514
          %v516 = vld [vmem:[%s44 + $0x758] sm:$0xff]
          %517 = vst [vmem:[%s45 + $0x758] sm:$0xff] %v516
          %v518 = vld [vmem:[%s44 + $0x760] sm:$0xff]
          %519 = vst [vmem:[%s45 + $0x760] sm:$0xff] %v518
          %v520 = vld [vmem:[%s44 + $0x768] sm:$0xff]
          %521 = vst [vmem:[%s45 + $0x768] sm:$0xff] %v520
          %v522 = vld [vmem:[%s44 + $0x770] sm:$0xff]
          %523 = vst [vmem:[%s45 + $0x770] sm:$0xff] %v522
          %v524 = vld [vmem:[%s44 + $0x778] sm:$0xff]
          %525 = vst [vmem:[%s45 + $0x778] sm:$0xff] %v524
        $region33: #{tpu_custom_call.1} parent=27 // loop_footer
          %s43 = sadd.s32 1, %s39
        $region34: #{tpu_custom_call.1} parent=27 // loop_footer_branch
          %38 = sbr.rel target = $region30
        $region35: #{tpu_custom_call.1} parent=27 // loop_exit
          _
      $region28: #{tpu_custom_call.1} parent=12 // pred_fallthru
        _
      %p526 = pneg %p34
      // Predicated region
      $region36: #{tpu_custom_call.1} parent=12 // pred_check
        _
      $region37: #{tpu_custom_call.1} parent=12 // pred_check_branch
        %528 = sbr.rel (%p34) target = $region39
      $region38: #{tpu_custom_call.1} parent=12 // pred_region
        %s529 = sand.u32 1920, 7
      $region39: #{tpu_custom_call.1} parent=12 // pred_fallthru
        _
    $region13: #{tpu_custom_call.1} parent=1 // pred_fallthru
      _
    // Predicated region
    $region14: #{tpu_custom_call.1} parent=1 // pred_check
      %p19 = pneg %p15
    $region15: #{tpu_custom_call.1} parent=1 // pred_check_branch
      %21 = sbr.rel (%p19) target = $region17
    $region16: #{tpu_custom_call.1} parent=1 // pred_region
      %s22 = sshllo.u32 0, 1920
      loop: start=0, step=1, limit=1
      $region18: #{tpu_custom_call.1} parent=16 // loop_pre_header
        _
      $region19: #{tpu_custom_call.1} parent=16 // loop_header
        %s24 = sphi 0, %s28
        %p25 = scmp.ge.s32.totalorder %s24, 1
        %s29 = sphi %s2, %s2
        %s30 = sphi [#allocation2], [#allocation2]
      $region20: #{tpu_custom_call.1} parent=16 // loop_header_branch
        %27 = sbr.rel (%p25) target = $region24
      $region21: #{tpu_custom_call.1} parent=16 // loop_body
        %v31 = vld [vmem:[%s29] sm:%s22]
        %32 = vst [vmem:[%s30] sm:%s22] %v31
      $region22: #{tpu_custom_call.1} parent=16 // loop_footer
        %s28 = sadd.s32 1, %s24
      $region23: #{tpu_custom_call.1} parent=16 // loop_footer_branch
        %23 = sbr.rel target = $region19
      $region24: #{tpu_custom_call.1} parent=16 // loop_exit
        _
    $region17: #{tpu_custom_call.1} parent=1 // pred_fallthru
      _
    // Predicated region
    $region40: #{tpu_custom_call.1} parent=1 // pred_check
      _
    $region41: #{tpu_custom_call.1} parent=1 // pred_check_branch
      %532 = sbr.rel (0) target = $region43
    $region42: #{tpu_custom_call.1} parent=1 // pred_region
      %533 = vsyncadd [#allocation3], 30720
    $region43: #{tpu_custom_call.1} parent=1 // pred_fallthru
      _
    %v534 = vld [vmem:[%s1] sm:$0xff]
    %v535 = vxor.u32 %v534, 2147483648
    %v536 = vmul.f32 %v535, 1.442695
    %v537 = vpow.pop %v536
    %v538 = vadd.f32 %v537, 1.0
    %v539 = vrcp.pop %v538
    %v540 = vmul.f32 1.0, %v539
    %v541 = vld [vmem:[%s0] sm:$0xff]
    %v542 = vld [vmem:[%s0 + $0x8] sm:$0xff]
    %v543 = vld [vmem:[%s0 + $0x10] sm:$0xff]
    %v544 = vld [vmem:[%s0 + $0x18] sm:$0xff]
    %v545 = vld [vmem:[%s0 + $0x20] sm:$0xff]
    %v546 = vld [vmem:[%s0 + $0x28] sm:$0xff]
    %v547 = vld [vmem:[%s0 + $0x30] sm:$0xff]
    %v548 = vld [vmem:[%s0 + $0x38] sm:$0xff]
    %v549 = vld [vmem:[%s0 + $0x40] sm:$0xff]
    %v550 = vld [vmem:[%s0 + $0x48] sm:$0xff]
    %v551 = vld [vmem:[%s0 + $0x50] sm:$0xff]
    %v552 = vld [vmem:[%s0 + $0x58] sm:$0xff]
    %v553 = vld [vmem:[%s0 + $0x60] sm:$0xff]
    %v554 = vld [vmem:[%s0 + $0x68] sm:$0xff]
    %v555 = vld [vmem:[%s0 + $0x70] sm:$0xff]
    %v556 = vld [vmem:[%s0 + $0x78] sm:$0xff]
    %v557 = vld [vmem:[%s0 + $0x80] sm:$0xff]
    %v558 = vld [vmem:[%s0 + $0x88] sm:$0xff]
    %v559 = vld [vmem:[%s0 + $0x90] sm:$0xff]
    %v560 = vld [vmem:[%s0 + $0x98] sm:$0xff]
    %v561 = vld [vmem:[%s0 + $0xa0] sm:$0xff]
    %v562 = vld [vmem:[%s0 + $0xa8] sm:$0xff]
    %v563 = vld [vmem:[%s0 + $0xb0] sm:$0xff]
    %v564 = vld [vmem:[%s0 + $0xb8] sm:$0xff]
    %v565 = vld [vmem:[%s0 + $0xc0] sm:$0xff]
    %v566 = vld [vmem:[%s0 + $0xc8] sm:$0xff]
    %v567 = vld [vmem:[%s0 + $0xd0] sm:$0xff]
    %v568 = vld [vmem:[%s0 + $0xd8] sm:$0xff]
    %v569 = vld [vmem:[%s0 + $0xe0] sm:$0xff]
    %v570 = vld [vmem:[%s0 + $0xe8] sm:$0xff]
    %v571 = vld [vmem:[%s0 + $0xf0] sm:$0xff]
    %v572 = vld [vmem:[%s0 + $0xf8] sm:$0xff]
    %v573 = vld [vmem:[%s0 + $0x100] sm:$0xff]
    %v574 = vld [vmem:[%s0 + $0x108] sm:$0xff]
    %v575 = vld [vmem:[%s0 + $0x110] sm:$0xff]
    %v576 = vld [vmem:[%s0 + $0x118] sm:$0xff]
    %v577 = vld [vmem:[%s0 + $0x120] sm:$0xff]
    %v578 = vld [vmem:[%s0 + $0x128] sm:$0xff]
    %v579 = vld [vmem:[%s0 + $0x130] sm:$0xff]
    %v580 = vld [vmem:[%s0 + $0x138] sm:$0xff]
    %v581 = vld [vmem:[%s0 + $0x140] sm:$0xff]
    %v582 = vld [vmem:[%s0 + $0x148] sm:$0xff]
    %v583 = vld [vmem:[%s0 + $0x150] sm:$0xff]
    %v584 = vld [vmem:[%s0 + $0x158] sm:$0xff]
    %v585 = vld [vmem:[%s0 + $0x160] sm:$0xff]
    %v586 = vld [vmem:[%s0 + $0x168] sm:$0xff]
    %v587 = vld [vmem:[%s0 + $0x170] sm:$0xff]
    %v588 = vld [vmem:[%s0 + $0x178] sm:$0xff]
    %v589 = vld [vmem:[%s0 + $0x180] sm:$0xff]
    %v590 = vld [vmem:[%s0 + $0x188] sm:$0xff]
    %v591 = vld [vmem:[%s0 + $0x190] sm:$0xff]
    %v592 = vld [vmem:[%s0 + $0x198] sm:$0xff]
    %v593 = vld [vmem:[%s0 + $0x1a0] sm:$0xff]
    %v594 = vld [vmem:[%s0 + $0x1a8] sm:$0xff]
    %v595 = vld [vmem:[%s0 + $0x1b0] sm:$0xff]
    %v596 = vld [vmem:[%s0 + $0x1b8] sm:$0xff]
    %v597 = vld [vmem:[%s0 + $0x1c0] sm:$0xff]
    %v598 = vld [vmem:[%s0 + $0x1c8] sm:$0xff]
    %v599 = vld [vmem:[%s0 + $0x1d0] sm:$0xff]
    %v600 = vld [vmem:[%s0 + $0x1d8] sm:$0xff]
    %v601 = vld [vmem:[%s0 + $0x1e0] sm:$0xff]
    %v602 = vld [vmem:[%s0 + $0x1e8] sm:$0xff]
    %v603 = vld [vmem:[%s0 + $0x1f0] sm:$0xff]
    %v604 = vld [vmem:[%s0 + $0x1f8] sm:$0xff]
    %v605 = vld [vmem:[%s0 + $0x200] sm:$0xff]
    %v606 = vld [vmem:[%s0 + $0x208] sm:$0xff]
    %v607 = vld [vmem:[%s0 + $0x210] sm:$0xff]
    %v608 = vld [vmem:[%s0 + $0x218] sm:$0xff]
    %v609 = vld [vmem:[%s0 + $0x220] sm:$0xff]
    %v610 = vld [vmem:[%s0 + $0x228] sm:$0xff]
    %v611 = vld [vmem:[%s0 + $0x230] sm:$0xff]
    %v612 = vld [vmem:[%s0 + $0x238] sm:$0xff]
    %v613 = vld [vmem:[%s0 + $0x240] sm:$0xff]
    %v614 = vld [vmem:[%s0 + $0x248] sm:$0xff]
    %v615 = vld [vmem:[%s0 + $0x250] sm:$0xff]
    %v616 = vld [vmem:[%s0 + $0x258] sm:$0xff]
    %v617 = vld [vmem:[%s0 + $0x260] sm:$0xff]
    %v618 = vld [vmem:[%s0 + $0x268] sm:$0xff]
    %v619 = vld [vmem:[%s0 + $0x270] sm:$0xff]
    %v620 = vld [vmem:[%s0 + $0x278] sm:$0xff]
    %v621 = vunpack.c.l.bf16 %v541
    %v622 = vunpack.c.h.bf16 %v541
    %v623 = vunpack.c.l.bf16 %v542
    %v624 = vunpack.c.h.bf16 %v542
    %v625 = vunpack.c.l.bf16 %v543
    %v626 = vunpack.c.h.bf16 %v543
    %v627 = vunpack.c.l.bf16 %v544
    %v628 = vunpack.c.h.bf16 %v544
    %v629 = vunpack.c.l.bf16 %v545
    %v630 = vunpack.c.h.bf16 %v545
    %v631 = vunpack.c.l.bf16 %v546
    %v632 = vunpack.c.h.bf16 %v546
    %v633 = vunpack.c.l.bf16 %v547
    %v634 = vunpack.c.h.bf16 %v547
    %v635 = vunpack.c.l.bf16 %v548
    %v636 = vunpack.c.h.bf16 %v548
    %v637 = vunpack.c.l.bf16 %v549
    %v638 = vunpack.c.h.bf16 %v549
    %v639 = vunpack.c.l.bf16 %v550
    %v640 = vunpack.c.h.bf16 %v550
    %v641 = vunpack.c.l.bf16 %v551
    %v642 = vunpack.c.h.bf16 %v551
    %v643 = vunpack.c.l.bf16 %v552
    %v644 = vunpack.c.h.bf16 %v552
    %v645 = vunpack.c.l.bf16 %v553
    %v646 = vunpack.c.h.bf16 %v553
    %v647 = vunpack.c.l.bf16 %v554
    %v648 = vunpack.c.h.bf16 %v554
    %v649 = vunpack.c.l.bf16 %v555
    %v650 = vunpack.c.h.bf16 %v555
    %v651 = vunpack.c.l.bf16 %v556
    %v652 = vunpack.c.h.bf16 %v556
    %v653 = vunpack.c.l.bf16 %v557
    %v654 = vunpack.c.h.bf16 %v557
    %v655 = vunpack.c.l.bf16 %v558
    %v656 = vunpack.c.h.bf16 %v558
    %v657 = vunpack.c.l.bf16 %v559
    %v658 = vunpack.c.h.bf16 %v559
    %v659 = vunpack.c.l.bf16 %v560
    %v660 = vunpack.c.h.bf16 %v560
    %v661 = vunpack.c.l.bf16 %v561
    %v662 = vunpack.c.h.bf16 %v561
    %v663 = vunpack.c.l.bf16 %v562
    %v664 = vunpack.c.h.bf16 %v562
    %v665 = vunpack.c.l.bf16 %v563
    %v666 = vunpack.c.h.bf16 %v563
    %v667 = vunpack.c.l.bf16 %v564
    %v668 = vunpack.c.h.bf16 %v564
    %v669 = vunpack.c.l.bf16 %v565
    %v670 = vunpack.c.h.bf16 %v565
    %v671 = vunpack.c.l.bf16 %v566
    %v672 = vunpack.c.h.bf16 %v566
    %v673 = vunpack.c.l.bf16 %v567
    %v674 = vunpack.c.h.bf16 %v567
    %v675 = vunpack.c.l.bf16 %v568
    %v676 = vunpack.c.h.bf16 %v568
    %v677 = vunpack.c.l.bf16 %v569
    %v678 = vunpack.c.h.bf16 %v569
    %v679 = vunpack.c.l.bf16 %v570
    %v680 = vunpack.c.h.bf16 %v570
    %v681 = vunpack.c.l.bf16 %v571
    %v682 = vunpack.c.h.bf16 %v571
    %v683 = vunpack.c.l.bf16 %v572
    %v684 = vunpack.c.h.bf16 %v572
    %v685 = vunpack.c.l.bf16 %v573
    %v686 = vunpack.c.h.bf16 %v573
    %v687 = vunpack.c.l.bf16 %v574
    %v688 = vunpack.c.h.bf16 %v574
    %v689 = vunpack.c.l.bf16 %v575
    %v690 = vunpack.c.h.bf16 %v575
    %v691 = vunpack.c.l.bf16 %v576
    %v692 = vunpack.c.h.bf16 %v576
    %v693 = vunpack.c.l.bf16 %v577
    %v694 = vunpack.c.h.bf16 %v577
    %v695 = vunpack.c.l.bf16 %v578
    %v696 = vunpack.c.h.bf16 %v578
    %v697 = vunpack.c.l.bf16 %v579
    %v698 = vunpack.c.h.bf16 %v579
    %v699 = vunpack.c.l.bf16 %v580
    %v700 = vunpack.c.h.bf16 %v580
    %v701 = vunpack.c.l.bf16 %v581
    %v702 = vunpack.c.h.bf16 %v581
    %v703 = vunpack.c.l.bf16 %v582
    %v704 = vunpack.c.h.bf16 %v582
    %v705 = vunpack.c.l.bf16 %v583
    %v706 = vunpack.c.h.bf16 %v583
    %v707 = vunpack.c.l.bf16 %v584
    %v708 = vunpack.c.h.bf16 %v584
    %v709 = vunpack.c.l.bf16 %v585
    %v710 = vunpack.c.h.bf16 %v585
    %v711 = vunpack.c.l.bf16 %v586
    %v712 = vunpack.c.h.bf16 %v586
    %v713 = vunpack.c.l.bf16 %v587
    %v714 = vunpack.c.h.bf16 %v587
    %v715 = vunpack.c.l.bf16 %v588
    %v716 = vunpack.c.h.bf16 %v588
    %v717 = vunpack.c.l.bf16 %v589
    %v718 = vunpack.c.h.bf16 %v589
    %v719 = vunpack.c.l.bf16 %v590
    %v720 = vunpack.c.h.bf16 %v590
    %v721 = vunpack.c.l.bf16 %v591
    %v722 = vunpack.c.h.bf16 %v591
    %v723 = vunpack.c.l.bf16 %v592
    %v724 = vunpack.c.h.bf16 %v592
    %v725 = vunpack.c.l.bf16 %v593
    %v726 = vunpack.c.h.bf16 %v593
    %v727 = vunpack.c.l.bf16 %v594
    %v728 = vunpack.c.h.bf16 %v594
    %v729 = vunpack.c.l.bf16 %v595
    %v730 = vunpack.c.h.bf16 %v595
    %v731 = vunpack.c.l.bf16 %v596
    %v732 = vunpack.c.h.bf16 %v596
    %v733 = vunpack.c.l.bf16 %v597
    %v734 = vunpack.c.h.bf16 %v597
    %v735 = vunpack.c.l.bf16 %v598
    %v736 = vunpack.c.h.bf16 %v598
    %v737 = vunpack.c.l.bf16 %v599
    %v738 = vunpack.c.h.bf16 %v599
    %v739 = vunpack.c.l.bf16 %v600
    %v740 = vunpack.c.h.bf16 %v600
    %v741 = vunpack.c.l.bf16 %v601
    %v742 = vunpack.c.h.bf16 %v601
    %v743 = vunpack.c.l.bf16 %v602
    %v744 = vunpack.c.h.bf16 %v602
    %v745 = vunpack.c.l.bf16 %v603
    %v746 = vunpack.c.h.bf16 %v603
    %v747 = vunpack.c.l.bf16 %v604
    %v748 = vunpack.c.h.bf16 %v604
    %v749 = vunpack.c.l.bf16 %v605
    %v750 = vunpack.c.h.bf16 %v605
    %v751 = vunpack.c.l.bf16 %v606
    %v752 = vunpack.c.h.bf16 %v606
    %v753 = vunpack.c.l.bf16 %v607
    %v754 = vunpack.c.h.bf16 %v607
    %v755 = vunpack.c.l.bf16 %v608
    %v756 = vunpack.c.h.bf16 %v608
    %v757 = vunpack.c.l.bf16 %v609
    %v758 = vunpack.c.h.bf16 %v609
    %v759 = vunpack.c.l.bf16 %v610
    %v760 = vunpack.c.h.bf16 %v610
    %v761 = vunpack.c.l.bf16 %v611
    %v762 = vunpack.c.h.bf16 %v611
    %v763 = vunpack.c.l.bf16 %v612
    %v764 = vunpack.c.h.bf16 %v612
    %v765 = vunpack.c.l.bf16 %v613
    %v766 = vunpack.c.h.bf16 %v613
    %v767 = vunpack.c.l.bf16 %v614
    %v768 = vunpack.c.h.bf16 %v614
    %v769 = vunpack.c.l.bf16 %v615
    %v770 = vunpack.c.h.bf16 %v615
    %v771 = vunpack.c.l.bf16 %v616
    %v772 = vunpack.c.h.bf16 %v616
    %v773 = vunpack.c.l.bf16 %v617
    %v774 = vunpack.c.h.bf16 %v617
    %v775 = vunpack.c.l.bf16 %v618
    %v776 = vunpack.c.h.bf16 %v618
    %v777 = vunpack.c.l.bf16 %v619
    %v778 = vunpack.c.h.bf16 %v619
    %v779 = vunpack.c.l.bf16 %v620
    %v780 = vunpack.c.h.bf16 %v620
    %v782 = vlaneseq
    %v783 = vshrl.u32 %v782, 7
    %v784 = vsub.s32 0, %v783
    %v785 = vrot.slane %v540, %v784
    %v786 = vlaneseq
    %v787 = vshrl.u32 %v786, 7
    %v788 = vsub.s32 1, %v787
    %v789 = vrot.slane %v540, %v788
    %v790 = vlaneseq
    %v791 = vshrl.u32 %v790, 7
    %v792 = vsub.s32 2, %v791
    %v793 = vrot.slane %v540, %v792
    %v794 = vlaneseq
    %v795 = vshrl.u32 %v794, 7
    %v796 = vsub.s32 3, %v795
    %v797 = vrot.slane %v540, %v796
    %v798 = vlaneseq
    %v799 = vshrl.u32 %v798, 7
    %v800 = vsub.s32 4, %v799
    %v801 = vrot.slane %v540, %v800
    %v802 = vlaneseq
    %v803 = vshrl.u32 %v802, 7
    %v804 = vsub.s32 5, %v803
    %v805 = vrot.slane %v540, %v804
    %v806 = vlaneseq
    %v807 = vshrl.u32 %v806, 7
    %v808 = vsub.s32 6, %v807
    %v809 = vrot.slane %v540, %v808
    %v810 = vlaneseq
    %v811 = vshrl.u32 %v810, 7
    %v812 = vsub.s32 7, %v811
    %v813 = vrot.slane %v540, %v812
    %v822 = vmul.f32 %v621, %v785
    %v823 = vmul.f32 %v622, %v789
    %v824 = vmul.f32 %v623, %v793
    %v825 = vmul.f32 %v624, %v797
    %v826 = vmul.f32 %v625, %v801
    %v827 = vmul.f32 %v626, %v805
    %v828 = vmul.f32 %v627, %v809
    %v829 = vmul.f32 %v628, %v813
    %v830 = vmul.f32 %v629, %v785
    %v831 = vmul.f32 %v630, %v789
    %v832 = vmul.f32 %v631, %v793
    %v833 = vmul.f32 %v632, %v797
    %v834 = vmul.f32 %v633, %v801
    %v835 = vmul.f32 %v634, %v805
    %v836 = vmul.f32 %v635, %v809
    %v837 = vmul.f32 %v636, %v813
    %v838 = vmul.f32 %v637, %v785
    %v839 = vmul.f32 %v638, %v789
    %v840 = vmul.f32 %v639, %v793
    %v841 = vmul.f32 %v640, %v797
    %v842 = vmul.f32 %v641, %v801
    %v843 = vmul.f32 %v642, %v805
    %v844 = vmul.f32 %v643, %v809
    %v845 = vmul.f32 %v644, %v813
    %v846 = vmul.f32 %v645, %v785
    %v847 = vmul.f32 %v646, %v789
    %v848 = vmul.f32 %v647, %v793
    %v849 = vmul.f32 %v648, %v797
    %v850 = vmul.f32 %v649, %v801
    %v851 = vmul.f32 %v650, %v805
    %v852 = vmul.f32 %v651, %v809
    %v853 = vmul.f32 %v652, %v813
    %v854 = vmul.f32 %v653, %v785
    %v855 = vmul.f32 %v654, %v789
    %v856 = vmul.f32 %v655, %v793
    %v857 = vmul.f32 %v656, %v797
    %v858 = vmul.f32 %v657, %v801
    %v859 = vmul.f32 %v658, %v805
    %v860 = vmul.f32 %v659, %v809
    %v861 = vmul.f32 %v660, %v813
    %v862 = vmul.f32 %v661, %v785
    %v863 = vmul.f32 %v662, %v789
    %v864 = vmul.f32 %v663, %v793
    %v865 = vmul.f32 %v664, %v797
    %v866 = vmul.f32 %v665, %v801
    %v867 = vmul.f32 %v666, %v805
    %v868 = vmul.f32 %v667, %v809
    %v869 = vmul.f32 %v668, %v813
    %v870 = vmul.f32 %v669, %v785
    %v871 = vmul.f32 %v670, %v789
    %v872 = vmul.f32 %v671, %v793
    %v873 = vmul.f32 %v672, %v797
    %v874 = vmul.f32 %v673, %v801
    %v875 = vmul.f32 %v674, %v805
    %v876 = vmul.f32 %v675, %v809
    %v877 = vmul.f32 %v676, %v813
    %v878 = vmul.f32 %v677, %v785
    %v879 = vmul.f32 %v678, %v789
    %v880 = vmul.f32 %v679, %v793
    %v881 = vmul.f32 %v680, %v797
    %v882 = vmul.f32 %v681, %v801
    %v883 = vmul.f32 %v682, %v805
    %v884 = vmul.f32 %v683, %v809
    %v885 = vmul.f32 %v684, %v813
    %v886 = vmul.f32 %v685, %v785
    %v887 = vmul.f32 %v686, %v789
    %v888 = vmul.f32 %v687, %v793
    %v889 = vmul.f32 %v688, %v797
    %v890 = vmul.f32 %v689, %v801
    %v891 = vmul.f32 %v690, %v805
    %v892 = vmul.f32 %v691, %v809
    %v893 = vmul.f32 %v692, %v813
    %v894 = vmul.f32 %v693, %v785
    %v895 = vmul.f32 %v694, %v789
    %v896 = vmul.f32 %v695, %v793
    %v897 = vmul.f32 %v696, %v797
    %v898 = vmul.f32 %v697, %v801
    %v899 = vmul.f32 %v698, %v805
    %v900 = vmul.f32 %v699, %v809
    %v901 = vmul.f32 %v700, %v813
    %v902 = vmul.f32 %v701, %v785
    %v903 = vmul.f32 %v702, %v789
    %v904 = vmul.f32 %v703, %v793
    %v905 = vmul.f32 %v704, %v797
    %v906 = vmul.f32 %v705, %v801
    %v907 = vmul.f32 %v706, %v805
    %v908 = vmul.f32 %v707, %v809
    %v909 = vmul.f32 %v708, %v813
    %v910 = vmul.f32 %v709, %v785
    %v911 = vmul.f32 %v710, %v789
    %v912 = vmul.f32 %v711, %v793
    %v913 = vmul.f32 %v712, %v797
    %v914 = vmul.f32 %v713, %v801
    %v915 = vmul.f32 %v714, %v805
    %v916 = vmul.f32 %v715, %v809
    %v917 = vmul.f32 %v716, %v813
    %v918 = vmul.f32 %v717, %v785
    %v919 = vmul.f32 %v718, %v789
    %v920 = vmul.f32 %v719, %v793
    %v921 = vmul.f32 %v720, %v797
    %v922 = vmul.f32 %v721, %v801
    %v923 = vmul.f32 %v722, %v805
    %v924 = vmul.f32 %v723, %v809
    %v925 = vmul.f32 %v724, %v813
    %v926 = vmul.f32 %v725, %v785
    %v927 = vmul.f32 %v726, %v789
    %v928 = vmul.f32 %v727, %v793
    %v929 = vmul.f32 %v728, %v797
    %v930 = vmul.f32 %v729, %v801
    %v931 = vmul.f32 %v730, %v805
    %v932 = vmul.f32 %v731, %v809
    %v933 = vmul.f32 %v732, %v813
    %v934 = vmul.f32 %v733, %v785
    %v935 = vmul.f32 %v734, %v789
    %v936 = vmul.f32 %v735, %v793
    %v937 = vmul.f32 %v736, %v797
    %v938 = vmul.f32 %v737, %v801
    %v939 = vmul.f32 %v738, %v805
    %v940 = vmul.f32 %v739, %v809
    %v941 = vmul.f32 %v740, %v813
    %v942 = vmul.f32 %v741, %v785
    %v943 = vmul.f32 %v742, %v789
    %v944 = vmul.f32 %v743, %v793
    %v945 = vmul.f32 %v744, %v797
    %v946 = vmul.f32 %v745, %v801
    %v947 = vmul.f32 %v746, %v805
    %v948 = vmul.f32 %v747, %v809
    %v949 = vmul.f32 %v748, %v813
    %v950 = vmul.f32 %v749, %v785
    %v951 = vmul.f32 %v750, %v789
    %v952 = vmul.f32 %v751, %v793
    %v953 = vmul.f32 %v752, %v797
    %v954 = vmul.f32 %v753, %v801
    %v955 = vmul.f32 %v754, %v805
    %v956 = vmul.f32 %v755, %v809
    %v957 = vmul.f32 %v756, %v813
    %v958 = vmul.f32 %v757, %v785
    %v959 = vmul.f32 %v758, %v789
    %v960 = vmul.f32 %v759, %v793
    %v961 = vmul.f32 %v760, %v797
    %v962 = vmul.f32 %v761, %v801
    %v963 = vmul.f32 %v762, %v805
    %v964 = vmul.f32 %v763, %v809
    %v965 = vmul.f32 %v764, %v813
    %v966 = vmul.f32 %v765, %v785
    %v967 = vmul.f32 %v766, %v789
    %v968 = vmul.f32 %v767, %v793
    %v969 = vmul.f32 %v768, %v797
    %v970 = vmul.f32 %v769, %v801
    %v971 = vmul.f32 %v770, %v805
    %v972 = vmul.f32 %v771, %v809
    %v973 = vmul.f32 %v772, %v813
    %v974 = vmul.f32 %v773, %v785
    %v975 = vmul.f32 %v774, %v789
    %v976 = vmul.f32 %v775, %v793
    %v977 = vmul.f32 %v776, %v797
    %v978 = vmul.f32 %v777, %v801
    %v979 = vmul.f32 %v778, %v805
    %v980 = vmul.f32 %v779, %v809
    %v981 = vmul.f32 %v780, %v813
    %v982 = vpack.c.bf16 %v830, %v822
    %v983 = vpack.c.bf16 %v831, %v823
    %v984 = vpack.c.bf16 %v832, %v824
    %v985 = vpack.c.bf16 %v833, %v825
    %v986 = vpack.c.bf16 %v834, %v826
    %v987 = vpack.c.bf16 %v835, %v827
    %v988 = vpack.c.bf16 %v836, %v828
    %v989 = vpack.c.bf16 %v837, %v829
    %v990 = vpack.c.bf16 %v846, %v838
    %v991 = vpack.c.bf16 %v847, %v839
    %v992 = vpack.c.bf16 %v848, %v840
    %v993 = vpack.c.bf16 %v849, %v841
    %v994 = vpack.c.bf16 %v850, %v842
    %v995 = vpack.c.bf16 %v851, %v843
    %v996 = vpack.c.bf16 %v852, %v844
    %v997 = vpack.c.bf16 %v853, %v845
    %v998 = vpack.c.bf16 %v862, %v854
    %v999 = vpack.c.bf16 %v863, %v855
    %v1000 = vpack.c.bf16 %v864, %v856
    %v1001 = vpack.c.bf16 %v865, %v857
    %v1002 = vpack.c.bf16 %v866, %v858
    %v1003 = vpack.c.bf16 %v867, %v859
    %v1004 = vpack.c.bf16 %v868, %v860
    %v1005 = vpack.c.bf16 %v869, %v861
    %v1006 = vpack.c.bf16 %v878, %v870
    %v1007 = vpack.c.bf16 %v879, %v871
    %v1008 = vpack.c.bf16 %v880, %v872
    %v1009 = vpack.c.bf16 %v881, %v873
    %v1010 = vpack.c.bf16 %v882, %v874
    %v1011 = vpack.c.bf16 %v883, %v875
    %v1012 = vpack.c.bf16 %v884, %v876
    %v1013 = vpack.c.bf16 %v885, %v877
    %v1014 = vpack.c.bf16 %v894, %v886
    %v1015 = vpack.c.bf16 %v895, %v887
    %v1016 = vpack.c.bf16 %v896, %v888
    %v1017 = vpack.c.bf16 %v897, %v889
    %v1018 = vpack.c.bf16 %v898, %v890
    %v1019 = vpack.c.bf16 %v899, %v891
    %v1020 = vpack.c.bf16 %v900, %v892
    %v1021 = vpack.c.bf16 %v901, %v893
    %v1022 = vpack.c.bf16 %v910, %v902
    %v1023 = vpack.c.bf16 %v911, %v903
    %v1024 = vpack.c.bf16 %v912, %v904
    %v1025 = vpack.c.bf16 %v913, %v905
    %v1026 = vpack.c.bf16 %v914, %v906
    %v1027 = vpack.c.bf16 %v915, %v907
    %v1028 = vpack.c.bf16 %v916, %v908
    %v1029 = vpack.c.bf16 %v917, %v909
    %v1030 = vpack.c.bf16 %v926, %v918
    %v1031 = vpack.c.bf16 %v927, %v919
    %v1032 = vpack.c.bf16 %v928, %v920
    %v1033 = vpack.c.bf16 %v929, %v921
    %v1034 = vpack.c.bf16 %v930, %v922
    %v1035 = vpack.c.bf16 %v931, %v923
    %v1036 = vpack.c.bf16 %v932, %v924
    %v1037 = vpack.c.bf16 %v933, %v925
    %v1038 = vpack.c.bf16 %v942, %v934
    %v1039 = vpack.c.bf16 %v943, %v935
    %v1040 = vpack.c.bf16 %v944, %v936
    %v1041 = vpack.c.bf16 %v945, %v937
    %v1042 = vpack.c.bf16 %v946, %v938
    %v1043 = vpack.c.bf16 %v947, %v939
    %v1044 = vpack.c.bf16 %v948, %v940
    %v1045 = vpack.c.bf16 %v949, %v941
    %v1046 = vpack.c.bf16 %v958, %v950
    %v1047 = vpack.c.bf16 %v959, %v951
    %v1048 = vpack.c.bf16 %v960, %v952
    %v1049 = vpack.c.bf16 %v961, %v953
    %v1050 = vpack.c.bf16 %v962, %v954
    %v1051 = vpack.c.bf16 %v963, %v955
    %v1052 = vpack.c.bf16 %v964, %v956
    %v1053 = vpack.c.bf16 %v965, %v957
    %v1054 = vpack.c.bf16 %v974, %v966
    %v1055 = vpack.c.bf16 %v975, %v967
    %v1056 = vpack.c.bf16 %v976, %v968
    %v1057 = vpack.c.bf16 %v977, %v969
    %v1058 = vpack.c.bf16 %v978, %v970
    %v1059 = vpack.c.bf16 %v979, %v971
    %v1060 = vpack.c.bf16 %v980, %v972
    %v1061 = vpack.c.bf16 %v981, %v973
    %s1062 = smul.u32 8, 120
    %s1063 = smul.u32 %s1062, 2
    %s1064 = sshll.u32 %s1063, 4
    %1065 = dma.done [#allocation3], %s1064
    %v1066 = vld [vmem:[#allocation2] sm:$0xff]
    %v1067 = vld [vmem:[#allocation2 + $0x8] sm:$0xff]
    %v1068 = vld [vmem:[#allocation2 + $0x10] sm:$0xff]
    %v1069 = vld [vmem:[#allocation2 + $0x18] sm:$0xff]
    %v1070 = vld [vmem:[#allocation2 + $0x20] sm:$0xff]
    %v1071 = vld [vmem:[#allocation2 + $0x28] sm:$0xff]
    %v1072 = vld [vmem:[#allocation2 + $0x30] sm:$0xff]
    %v1073 = vld [vmem:[#allocation2 + $0x38] sm:$0xff]
    %v1074 = vld [vmem:[#allocation2 + $0x40] sm:$0xff]
    %v1075 = vld [vmem:[#allocation2 + $0x48] sm:$0xff]
    %v1076 = vld [vmem:[#allocation2 + $0x50] sm:$0xff]
    %v1077 = vld [vmem:[#allocation2 + $0x58] sm:$0xff]
    %v1078 = vld [vmem:[#allocation2 + $0x60] sm:$0xff]
    %v1079 = vld [vmem:[#allocation2 + $0x68] sm:$0xff]
    %v1080 = vld [vmem:[#allocation2 + $0x70] sm:$0xff]
    %v1081 = vld [vmem:[#allocation2 + $0x78] sm:$0xff]
    %v1082 = vld [vmem:[#allocation2 + $0x80] sm:$0xff]
    %v1083 = vld [vmem:[#allocation2 + $0x88] sm:$0xff]
    %v1084 = vld [vmem:[#allocation2 + $0x90] sm:$0xff]
    %v1085 = vld [vmem:[#allocation2 + $0x98] sm:$0xff]
    %v1086 = vld [vmem:[#allocation2 + $0xa0] sm:$0xff]
    %v1087 = vld [vmem:[#allocation2 + $0xa8] sm:$0xff]
    %v1088 = vld [vmem:[#allocation2 + $0xb0] sm:$0xff]
    %v1089 = vld [vmem:[#allocation2 + $0xb8] sm:$0xff]
    %v1090 = vld [vmem:[#allocation2 + $0xc0] sm:$0xff]
    %v1091 = vld [vmem:[#allocation2 + $0xc8] sm:$0xff]
    %v1092 = vld [vmem:[#allocation2 + $0xd0] sm:$0xff]
    %v1093 = vld [vmem:[#allocation2 + $0xd8] sm:$0xff]
    %v1094 = vld [vmem:[#allocation2 + $0xe0] sm:$0xff]
    %v1095 = vld [vmem:[#allocation2 + $0xe8] sm:$0xff]
    %v1096 = vld [vmem:[#allocation2 + $0xf0] sm:$0xff]
    %v1097 = vld [vmem:[#allocation2 + $0xf8] sm:$0xff]
    %v1098 = vld [vmem:[#allocation2 + $0x100] sm:$0xff]
    %v1099 = vld [vmem:[#allocation2 + $0x108] sm:$0xff]
    %v1100 = vld [vmem:[#allocation2 + $0x110] sm:$0xff]
    %v1101 = vld [vmem:[#allocation2 + $0x118] sm:$0xff]
    %v1102 = vld [vmem:[#allocation2 + $0x120] sm:$0xff]
    %v1103 = vld [vmem:[#allocation2 + $0x128] sm:$0xff]
    %v1104 = vld [vmem:[#allocation2 + $0x130] sm:$0xff]
    %v1105 = vld [vmem:[#allocation2 + $0x138] sm:$0xff]
    %v1106 = vld [vmem:[#allocation2 + $0x140] sm:$0xff]
    %v1107 = vld [vmem:[#allocation2 + $0x148] sm:$0xff]
    %v1108 = vld [vmem:[#allocation2 + $0x150] sm:$0xff]
    %v1109 = vld [vmem:[#allocation2 + $0x158] sm:$0xff]
    %v1110 = vld [vmem:[#allocation2 + $0x160] sm:$0xff]
    %v1111 = vld [vmem:[#allocation2 + $0x168] sm:$0xff]
    %v1112 = vld [vmem:[#allocation2 + $0x170] sm:$0xff]
    %v1113 = vld [vmem:[#allocation2 + $0x178] sm:$0xff]
    %v1114 = vld [vmem:[#allocation2 + $0x180] sm:$0xff]
    %v1115 = vld [vmem:[#allocation2 + $0x188] sm:$0xff]
    %v1116 = vld [vmem:[#allocation2 + $0x190] sm:$0xff]
    %v1117 = vld [vmem:[#allocation2 + $0x198] sm:$0xff]
    %v1118 = vld [vmem:[#allocation2 + $0x1a0] sm:$0xff]
    %v1119 = vld [vmem:[#allocation2 + $0x1a8] sm:$0xff]
    %v1120 = vld [vmem:[#allocation2 + $0x1b0] sm:$0xff]
    %v1121 = vld [vmem:[#allocation2 + $0x1b8] sm:$0xff]
    %v1122 = vld [vmem:[#allocation2 + $0x1c0] sm:$0xff]
    %v1123 = vld [vmem:[#allocation2 + $0x1c8] sm:$0xff]
    %v1124 = vld [vmem:[#allocation2 + $0x1d0] sm:$0xff]
    %v1125 = vld [vmem:[#allocation2 + $0x1d8] sm:$0xff]
    %v1126 = vld [vmem:[#allocation2 + $0x1e0] sm:$0xff]
    %v1127 = vld [vmem:[#allocation2 + $0x1e8] sm:$0xff]
    %v1128 = vld [vmem:[#allocation2 + $0x1f0] sm:$0xff]
    %v1129 = vld [vmem:[#allocation2 + $0x1f8] sm:$0xff]
    %v1130 = vld [vmem:[#allocation2 + $0x200] sm:$0xff]
    %v1131 = vld [vmem:[#allocation2 + $0x208] sm:$0xff]
    %v1132 = vld [vmem:[#allocation2 + $0x210] sm:$0xff]
    %v1133 = vld [vmem:[#allocation2 + $0x218] sm:$0xff]
    %v1134 = vld [vmem:[#allocation2 + $0x220] sm:$0xff]
    %v1135 = vld [vmem:[#allocation2 + $0x228] sm:$0xff]
    %v1136 = vld [vmem:[#allocation2 + $0x230] sm:$0xff]
    %v1137 = vld [vmem:[#allocation2 + $0x238] sm:$0xff]
    %v1138 = vld [vmem:[#allocation2 + $0x240] sm:$0xff]
    %v1139 = vld [vmem:[#allocation2 + $0x248] sm:$0xff]
    %v1140 = vld [vmem:[#allocation2 + $0x250] sm:$0xff]
    %v1141 = vld [vmem:[#allocation2 + $0x258] sm:$0xff]
    %v1142 = vld [vmem:[#allocation2 + $0x260] sm:$0xff]
    %v1143 = vld [vmem:[#allocation2 + $0x268] sm:$0xff]
    %v1144 = vld [vmem:[#allocation2 + $0x270] sm:$0xff]
    %v1145 = vld [vmem:[#allocation2 + $0x278] sm:$0xff]
    %v1146 = vld [vmem:[#allocation2 + $0x280] sm:$0xff]
    %v1147 = vld [vmem:[#allocation2 + $0x288] sm:$0xff]
    %v1148 = vld [vmem:[#allocation2 + $0x290] sm:$0xff]
    %v1149 = vld [vmem:[#allocation2 + $0x298] sm:$0xff]
    %v1150 = vld [vmem:[#allocation2 + $0x2a0] sm:$0xff]
    %v1151 = vld [vmem:[#allocation2 + $0x2a8] sm:$0xff]
    %v1152 = vld [vmem:[#allocation2 + $0x2b0] sm:$0xff]
    %v1153 = vld [vmem:[#allocation2 + $0x2b8] sm:$0xff]
    %v1154 = vld [vmem:[#allocation2 + $0x2c0] sm:$0xff]
    %v1155 = vld [vmem:[#allocation2 + $0x2c8] sm:$0xff]
    %v1156 = vld [vmem:[#allocation2 + $0x2d0] sm:$0xff]
    %v1157 = vld [vmem:[#allocation2 + $0x2d8] sm:$0xff]
    %v1158 = vld [vmem:[#allocation2 + $0x2e0] sm:$0xff]
    %v1159 = vld [vmem:[#allocation2 + $0x2e8] sm:$0xff]
    %v1160 = vld [vmem:[#allocation2 + $0x2f0] sm:$0xff]
    %v1161 = vld [vmem:[#allocation2 + $0x2f8] sm:$0xff]
    %v1162 = vld [vmem:[#allocation2 + $0x300] sm:$0xff]
    %v1163 = vld [vmem:[#allocation2 + $0x308] sm:$0xff]
    %v1164 = vld [vmem:[#allocation2 + $0x310] sm:$0xff]
    %v1165 = vld [vmem:[#allocation2 + $0x318] sm:$0xff]
    %v1166 = vld [vmem:[#allocation2 + $0x320] sm:$0xff]
    %v1167 = vld [vmem:[#allocation2 + $0x328] sm:$0xff]
    %v1168 = vld [vmem:[#allocation2 + $0x330] sm:$0xff]
    %v1169 = vld [vmem:[#allocation2 + $0x338] sm:$0xff]
    %v1170 = vld [vmem:[#allocation2 + $0x340] sm:$0xff]
    %v1171 = vld [vmem:[#allocation2 + $0x348] sm:$0xff]
    %v1172 = vld [vmem:[#allocation2 + $0x350] sm:$0xff]
    %v1173 = vld [vmem:[#allocation2 + $0x358] sm:$0xff]
    %v1174 = vld [vmem:[#allocation2 + $0x360] sm:$0xff]
    %v1175 = vld [vmem:[#allocation2 + $0x368] sm:$0xff]
    %v1176 = vld [vmem:[#allocation2 + $0x370] sm:$0xff]
    %v1177 = vld [vmem:[#allocation2 + $0x378] sm:$0xff]
    %v1178 = vld [vmem:[#allocation2 + $0x380] sm:$0xff]
    %v1179 = vld [vmem:[#allocation2 + $0x388] sm:$0xff]
    %v1180 = vld [vmem:[#allocation2 + $0x390] sm:$0xff]
    %v1181 = vld [vmem:[#allocation2 + $0x398] sm:$0xff]
    %v1182 = vld [vmem:[#allocation2 + $0x3a0] sm:$0xff]
    %v1183 = vld [vmem:[#allocation2 + $0x3a8] sm:$0xff]
    %v1184 = vld [vmem:[#allocation2 + $0x3b0] sm:$0xff]
    %v1185 = vld [vmem:[#allocation2 + $0x3b8] sm:$0xff]
    %v1186 = vld [vmem:[#allocation2 + $0x3c0] sm:$0xff]
    %v1187 = vld [vmem:[#allocation2 + $0x3c8] sm:$0xff]
    %v1188 = vld [vmem:[#allocation2 + $0x3d0] sm:$0xff]
    %v1189 = vld [vmem:[#allocation2 + $0x3d8] sm:$0xff]
    %v1190 = vld [vmem:[#allocation2 + $0x3e0] sm:$0xff]
    %v1191 = vld [vmem:[#allocation2 + $0x3e8] sm:$0xff]
    %v1192 = vld [vmem:[#allocation2 + $0x3f0] sm:$0xff]
    %v1193 = vld [vmem:[#allocation2 + $0x3f8] sm:$0xff]
    %v1194 = vld [vmem:[#allocation2 + $0x400] sm:$0xff]
    %v1195 = vld [vmem:[#allocation2 + $0x408] sm:$0xff]
    %v1196 = vld [vmem:[#allocation2 + $0x410] sm:$0xff]
    %v1197 = vld [vmem:[#allocation2 + $0x418] sm:$0xff]
    %v1198 = vld [vmem:[#allocation2 + $0x420] sm:$0xff]
    %v1199 = vld [vmem:[#allocation2 + $0x428] sm:$0xff]
    %v1200 = vld [vmem:[#allocation2 + $0x430] sm:$0xff]
    %v1201 = vld [vmem:[#allocation2 + $0x438] sm:$0xff]
    %v1202 = vld [vmem:[#allocation2 + $0x440] sm:$0xff]
    %v1203 = vld [vmem:[#allocation2 + $0x448] sm:$0xff]
    %v1204 = vld [vmem:[#allocation2 + $0x450] sm:$0xff]
    %v1205 = vld [vmem:[#allocation2 + $0x458] sm:$0xff]
    %v1206 = vld [vmem:[#allocation2 + $0x460] sm:$0xff]
    %v1207 = vld [vmem:[#allocation2 + $0x468] sm:$0xff]
    %v1208 = vld [vmem:[#allocation2 + $0x470] sm:$0xff]
    %v1209 = vld [vmem:[#allocation2 + $0x478] sm:$0xff]
    %v1210 = vld [vmem:[#allocation2 + $0x480] sm:$0xff]
    %v1211 = vld [vmem:[#allocation2 + $0x488] sm:$0xff]
    %v1212 = vld [vmem:[#allocation2 + $0x490] sm:$0xff]
    %v1213 = vld [vmem:[#allocation2 + $0x498] sm:$0xff]
    %v1214 = vld [vmem:[#allocation2 + $0x4a0] sm:$0xff]
    %v1215 = vld [vmem:[#allocation2 + $0x4a8] sm:$0xff]
    %v1216 = vld [vmem:[#allocation2 + $0x4b0] sm:$0xff]
    %v1217 = vld [vmem:[#allocation2 + $0x4b8] sm:$0xff]
    %v1218 = vld [vmem:[#allocation2 + $0x4c0] sm:$0xff]
    %v1219 = vld [vmem:[#allocation2 + $0x4c8] sm:$0xff]
    %v1220 = vld [vmem:[#allocation2 + $0x4d0] sm:$0xff]
    %v1221 = vld [vmem:[#allocation2 + $0x4d8] sm:$0xff]
    %v1222 = vld [vmem:[#allocation2 + $0x4e0] sm:$0xff]
    %v1223 = vld [vmem:[#allocation2 + $0x4e8] sm:$0xff]
    %v1224 = vld [vmem:[#allocation2 + $0x4f0] sm:$0xff]
    %v1225 = vld [vmem:[#allocation2 + $0x4f8] sm:$0xff]
    %v1226 = vld [vmem:[#allocation2 + $0x500] sm:$0xff]
    %v1227 = vld [vmem:[#allocation2 + $0x508] sm:$0xff]
    %v1228 = vld [vmem:[#allocation2 + $0x510] sm:$0xff]
    %v1229 = vld [vmem:[#allocation2 + $0x518] sm:$0xff]
    %v1230 = vld [vmem:[#allocation2 + $0x520] sm:$0xff]
    %v1231 = vld [vmem:[#allocation2 + $0x528] sm:$0xff]
    %v1232 = vld [vmem:[#allocation2 + $0x530] sm:$0xff]
    %v1233 = vld [vmem:[#allocation2 + $0x538] sm:$0xff]
    %v1234 = vld [vmem:[#allocation2 + $0x540] sm:$0xff]
    %v1235 = vld [vmem:[#allocation2 + $0x548] sm:$0xff]
    %v1236 = vld [vmem:[#allocation2 + $0x550] sm:$0xff]
    %v1237 = vld [vmem:[#allocation2 + $0x558] sm:$0xff]
    %v1238 = vld [vmem:[#allocation2 + $0x560] sm:$0xff]
    %v1239 = vld [vmem:[#allocation2 + $0x568] sm:$0xff]
    %v1240 = vld [vmem:[#allocation2 + $0x570] sm:$0xff]
    %v1241 = vld [vmem:[#allocation2 + $0x578] sm:$0xff]
    %v1242 = vld [vmem:[#allocation2 + $0x580] sm:$0xff]
    %v1243 = vld [vmem:[#allocation2 + $0x588] sm:$0xff]
    %v1244 = vld [vmem:[#allocation2 + $0x590] sm:$0xff]
    %v1245 = vld [vmem:[#allocation2 + $0x598] sm:$0xff]
    %v1246 = vld [vmem:[#allocation2 + $0x5a0] sm:$0xff]
    %v1247 = vld [vmem:[#allocation2 + $0x5a8] sm:$0xff]
    %v1248 = vld [vmem:[#allocation2 + $0x5b0] sm:$0xff]
    %v1249 = vld [vmem:[#allocation2 + $0x5b8] sm:$0xff]
    %v1250 = vld [vmem:[#allocation2 + $0x5c0] sm:$0xff]
    %v1251 = vld [vmem:[#allocation2 + $0x5c8] sm:$0xff]
    %v1252 = vld [vmem:[#allocation2 + $0x5d0] sm:$0xff]
    %v1253 = vld [vmem:[#allocation2 + $0x5d8] sm:$0xff]
    %v1254 = vld [vmem:[#allocation2 + $0x5e0] sm:$0xff]
    %v1255 = vld [vmem:[#allocation2 + $0x5e8] sm:$0xff]
    %v1256 = vld [vmem:[#allocation2 + $0x5f0] sm:$0xff]
    %v1257 = vld [vmem:[#allocation2 + $0x5f8] sm:$0xff]
    %v1258 = vld [vmem:[#allocation2 + $0x600] sm:$0xff]
    %v1259 = vld [vmem:[#allocation2 + $0x608] sm:$0xff]
    %v1260 = vld [vmem:[#allocation2 + $0x610] sm:$0xff]
    %v1261 = vld [vmem:[#allocation2 + $0x618] sm:$0xff]
    %v1262 = vld [vmem:[#allocation2 + $0x620] sm:$0xff]
    %v1263 = vld [vmem:[#allocation2 + $0x628] sm:$0xff]
    %v1264 = vld [vmem:[#allocation2 + $0x630] sm:$0xff]
    %v1265 = vld [vmem:[#allocation2 + $0x638] sm:$0xff]
    %v1266 = vld [vmem:[#allocation2 + $0x640] sm:$0xff]
    %v1267 = vld [vmem:[#allocation2 + $0x648] sm:$0xff]
    %v1268 = vld [vmem:[#allocation2 + $0x650] sm:$0xff]
    %v1269 = vld [vmem:[#allocation2 + $0x658] sm:$0xff]
    %v1270 = vld [vmem:[#allocation2 + $0x660] sm:$0xff]
    %v1271 = vld [vmem:[#allocation2 + $0x668] sm:$0xff]
    %v1272 = vld [vmem:[#allocation2 + $0x670] sm:$0xff]
    %v1273 = vld [vmem:[#allocation2 + $0x678] sm:$0xff]
    %v1274 = vld [vmem:[#allocation2 + $0x680] sm:$0xff]
    %v1275 = vld [vmem:[#allocation2 + $0x688] sm:$0xff]
    %v1276 = vld [vmem:[#allocation2 + $0x690] sm:$0xff]
    %v1277 = vld [vmem:[#allocation2 + $0x698] sm:$0xff]
    %v1278 = vld [vmem:[#allocation2 + $0x6a0] sm:$0xff]
    %v1279 = vld [vmem:[#allocation2 + $0x6a8] sm:$0xff]
    %v1280 = vld [vmem:[#allocation2 + $0x6b0] sm:$0xff]
    %v1281 = vld [vmem:[#allocation2 + $0x6b8] sm:$0xff]
    %v1282 = vld [vmem:[#allocation2 + $0x6c0] sm:$0xff]
    %v1283 = vld [vmem:[#allocation2 + $0x6c8] sm:$0xff]
    %v1284 = vld [vmem:[#allocation2 + $0x6d0] sm:$0xff]
    %v1285 = vld [vmem:[#allocation2 + $0x6d8] sm:$0xff]
    %v1286 = vld [vmem:[#allocation2 + $0x6e0] sm:$0xff]
    %v1287 = vld [vmem:[#allocation2 + $0x6e8] sm:$0xff]
    %v1288 = vld [vmem:[#allocation2 + $0x6f0] sm:$0xff]
    %v1289 = vld [vmem:[#allocation2 + $0x6f8] sm:$0xff]
    %v1290 = vld [vmem:[#allocation2 + $0x700] sm:$0xff]
    %v1291 = vld [vmem:[#allocation2 + $0x708] sm:$0xff]
    %v1292 = vld [vmem:[#allocation2 + $0x710] sm:$0xff]
    %v1293 = vld [vmem:[#allocation2 + $0x718] sm:$0xff]
    %v1294 = vld [vmem:[#allocation2 + $0x720] sm:$0xff]
    %v1295 = vld [vmem:[#allocation2 + $0x728] sm:$0xff]
    %v1296 = vld [vmem:[#allocation2 + $0x730] sm:$0xff]
    %v1297 = vld [vmem:[#allocation2 + $0x738] sm:$0xff]
    %v1298 = vld [vmem:[#allocation2 + $0x740] sm:$0xff]
    %v1299 = vld [vmem:[#allocation2 + $0x748] sm:$0xff]
    %v1300 = vld [vmem:[#allocation2 + $0x750] sm:$0xff]
    %v1301 = vld [vmem:[#allocation2 + $0x758] sm:$0xff]
    %v1302 = vld [vmem:[#allocation2 + $0x760] sm:$0xff]
    %v1303 = vld [vmem:[#allocation2 + $0x768] sm:$0xff]
    %v1304 = vld [vmem:[#allocation2 + $0x770] sm:$0xff]
    %v1305 = vld [vmem:[#allocation2 + $0x778] sm:$0xff]
    %v1306 = vpack.c.bf16 %v1068, %v1066
    %v1307 = vpack.c.bf16 %v1069, %v1067
    %v1308 = vpack.c.bf16 %v1072, %v1070
    %v1309 = vpack.c.bf16 %v1073, %v1071
    %v1310 = vpack.c.bf16 %v1076, %v1074
    %v1311 = vpack.c.bf16 %v1077, %v1075
    %v1312 = vpack.c.bf16 %v1080, %v1078
    %v1313 = vpack.c.bf16 %v1081, %v1079
    %v1314 = vpack.c.bf16 %v1084, %v1082
    %v1315 = vpack.c.bf16 %v1085, %v1083
    %v1316 = vpack.c.bf16 %v1088, %v1086
    %v1317 = vpack.c.bf16 %v1089, %v1087
    %v1318 = vpack.c.bf16 %v1092, %v1090
    %v1319 = vpack.c.bf16 %v1093, %v1091
    %v1320 = vpack.c.bf16 %v1096, %v1094
    %v1321 = vpack.c.bf16 %v1097, %v1095
    %v1322 = vpack.c.bf16 %v1100, %v1098
    %v1323 = vpack.c.bf16 %v1101, %v1099
    %v1324 = vpack.c.bf16 %v1104, %v1102
    %v1325 = vpack.c.bf16 %v1105, %v1103
    %v1326 = vpack.c.bf16 %v1108, %v1106
    %v1327 = vpack.c.bf16 %v1109, %v1107
    %v1328 = vpack.c.bf16 %v1112, %v1110
    %v1329 = vpack.c.bf16 %v1113, %v1111
    %v1330 = vpack.c.bf16 %v1116, %v1114
    %v1331 = vpack.c.bf16 %v1117, %v1115
    %v1332 = vpack.c.bf16 %v1120, %v1118
    %v1333 = vpack.c.bf16 %v1121, %v1119
    %v1334 = vpack.c.bf16 %v1124, %v1122
    %v1335 = vpack.c.bf16 %v1125, %v1123
    %v1336 = vpack.c.bf16 %v1128, %v1126
    %v1337 = vpack.c.bf16 %v1129, %v1127
    %v1338 = vpack.c.bf16 %v1132, %v1130
    %v1339 = vpack.c.bf16 %v1133, %v1131
    %v1340 = vpack.c.bf16 %v1136, %v1134
    %v1341 = vpack.c.bf16 %v1137, %v1135
    %v1342 = vpack.c.bf16 %v1140, %v1138
    %v1343 = vpack.c.bf16 %v1141, %v1139
    %v1344 = vpack.c.bf16 %v1144, %v1142
    %v1345 = vpack.c.bf16 %v1145, %v1143
    %v1346 = vpack.c.bf16 %v1148, %v1146
    %v1347 = vpack.c.bf16 %v1149, %v1147
    %v1348 = vpack.c.bf16 %v1152, %v1150
    %v1349 = vpack.c.bf16 %v1153, %v1151
    %v1350 = vpack.c.bf16 %v1156, %v1154
    %v1351 = vpack.c.bf16 %v1157, %v1155
    %v1352 = vpack.c.bf16 %v1160, %v1158
    %v1353 = vpack.c.bf16 %v1161, %v1159
    %v1354 = vpack.c.bf16 %v1164, %v1162
    %v1355 = vpack.c.bf16 %v1165, %v1163
    %v1356 = vpack.c.bf16 %v1168, %v1166
    %v1357 = vpack.c.bf16 %v1169, %v1167
    %v1358 = vpack.c.bf16 %v1172, %v1170
    %v1359 = vpack.c.bf16 %v1173, %v1171
    %v1360 = vpack.c.bf16 %v1176, %v1174
    %v1361 = vpack.c.bf16 %v1177, %v1175
    %v1362 = vpack.c.bf16 %v1180, %v1178
    %v1363 = vpack.c.bf16 %v1181, %v1179
    %v1364 = vpack.c.bf16 %v1184, %v1182
    %v1365 = vpack.c.bf16 %v1185, %v1183
    %v1366 = vpack.c.bf16 %v1188, %v1186
    %v1367 = vpack.c.bf16 %v1189, %v1187
    %v1368 = vpack.c.bf16 %v1192, %v1190
    %v1369 = vpack.c.bf16 %v1193, %v1191
    %v1370 = vpack.c.bf16 %v1196, %v1194
    %v1371 = vpack.c.bf16 %v1197, %v1195
    %v1372 = vpack.c.bf16 %v1200, %v1198
    %v1373 = vpack.c.bf16 %v1201, %v1199
    %v1374 = vpack.c.bf16 %v1204, %v1202
    %v1375 = vpack.c.bf16 %v1205, %v1203
    %v1376 = vpack.c.bf16 %v1208, %v1206
    %v1377 = vpack.c.bf16 %v1209, %v1207
    %v1378 = vpack.c.bf16 %v1212, %v1210
    %v1379 = vpack.c.bf16 %v1213, %v1211
    %v1380 = vpack.c.bf16 %v1216, %v1214
    %v1381 = vpack.c.bf16 %v1217, %v1215
    %v1382 = vpack.c.bf16 %v1220, %v1218
    %v1383 = vpack.c.bf16 %v1221, %v1219
    %v1384 = vpack.c.bf16 %v1224, %v1222
    %v1385 = vpack.c.bf16 %v1225, %v1223
    %v1386 = vpack.c.bf16 %v1228, %v1226
    %v1387 = vpack.c.bf16 %v1229, %v1227
    %v1388 = vpack.c.bf16 %v1232, %v1230
    %v1389 = vpack.c.bf16 %v1233, %v1231
    %v1390 = vpack.c.bf16 %v1236, %v1234
    %v1391 = vpack.c.bf16 %v1237, %v1235
    %v1392 = vpack.c.bf16 %v1240, %v1238
    %v1393 = vpack.c.bf16 %v1241, %v1239
    %v1394 = vpack.c.bf16 %v1244, %v1242
    %v1395 = vpack.c.bf16 %v1245, %v1243
    %v1396 = vpack.c.bf16 %v1248, %v1246
    %v1397 = vpack.c.bf16 %v1249, %v1247
    %v1398 = vpack.c.bf16 %v1252, %v1250
    %v1399 = vpack.c.bf16 %v1253, %v1251
    %v1400 = vpack.c.bf16 %v1256, %v1254
    %v1401 = vpack.c.bf16 %v1257, %v1255
    %v1402 = vpack.c.bf16 %v1260, %v1258
    %v1403 = vpack.c.bf16 %v1261, %v1259
    %v1404 = vpack.c.bf16 %v1264, %v1262
    %v1405 = vpack.c.bf16 %v1265, %v1263
    %v1406 = vpack.c.bf16 %v1268, %v1266
    %v1407 = vpack.c.bf16 %v1269, %v1267
    %v1408 = vpack.c.bf16 %v1272, %v1270
    %v1409 = vpack.c.bf16 %v1273, %v1271
    %v1410 = vpack.c.bf16 %v1276, %v1274
    %v1411 = vpack.c.bf16 %v1277, %v1275
    %v1412 = vpack.c.bf16 %v1280, %v1278
    %v1413 = vpack.c.bf16 %v1281, %v1279
    %v1414 = vpack.c.bf16 %v1284, %v1282
    %v1415 = vpack.c.bf16 %v1285, %v1283
    %v1416 = vpack.c.bf16 %v1288, %v1286
    %v1417 = vpack.c.bf16 %v1289, %v1287
    %v1418 = vpack.c.bf16 %v1292, %v1290
    %v1419 = vpack.c.bf16 %v1293, %v1291
    %v1420 = vpack.c.bf16 %v1296, %v1294
    %v1421 = vpack.c.bf16 %v1297, %v1295
    %v1422 = vpack.c.bf16 %v1300, %v1298
    %v1423 = vpack.c.bf16 %v1301, %v1299
    %v1424 = vpack.c.bf16 %v1304, %v1302
    %v1425 = vpack.c.bf16 %v1305, %v1303
    %vm1426 = vcmask 523264
    %v1428 = vsel %vm1426, %v989, 0
    %v1431 = vsel %vm1426, %v997, 0
    %v1434 = vsel %vm1426, %v1005, 0
    %v1437 = vsel %vm1426, %v1013, 0
    %v1440 = vsel %vm1426, %v1021, 0
    %v1443 = vsel %vm1426, %v1029, 0
    %v1446 = vsel %vm1426, %v1037, 0
    %v1449 = vsel %vm1426, %v1045, 0
    %v1452 = vsel %vm1426, %v1053, 0
    %v1455 = vsel %vm1426, %v1061, 0
    %1457 = vmatprep.subr.bf16.mxu0 %v1307
    %1458 = vmatpush1.bf16.msra.mxu0 %v1306
    %1459 = vmatprep.subr.bf16.mxu0 %v1309
    %1460 = vmatpush1.bf16.msra.mxu0 %v1308
    %1461 = vmatprep.subr.bf16.mxu0 %v1311
    %1462 = vmatpush1.bf16.msra.mxu0 %v1310
    %1463 = vmatprep.subr.bf16.mxu0 %v1313
    %1464 = vmatpush1.bf16.msra.mxu0 %v1312
    %1465 = vmatprep.subr.bf16.mxu0 %v1315
    %1466 = vmatpush1.bf16.msra.mxu0 %v1314
    %1467 = vmatprep.subr.bf16.mxu0 %v1317
    %1468 = vmatpush1.bf16.msra.mxu0 %v1316
    %1469 = vmatprep.subr.bf16.mxu0 %v1319
    %1470 = vmatpush1.bf16.msra.mxu0 %v1318
    %1471 = vmatprep.subr.bf16.mxu0 %v1321
    %1472 = vmatpush1.bf16.msra.mxu0 %v1320
    %1473 = vmatprep.subr.bf16.mxu0 %v1323
    %1474 = vmatpush1.bf16.msra.mxu0 %v1322
    %1475 = vmatprep.subr.bf16.mxu0 %v1325
    %1476 = vmatpush1.bf16.msra.mxu0 %v1324
    %1477 = vmatprep.subr.bf16.mxu0 %v1327
    %1478 = vmatpush1.bf16.msra.mxu0 %v1326
    %1479 = vmatprep.subr.bf16.mxu0 %v1329
    %1480 = vmatpush1.bf16.msra.mxu0 %v1328
    %1481 = vmatprep.subr.bf16.mxu0 %v1331
    %1482 = vmatpush1.bf16.msra.mxu0 %v1330
    %1483 = vmatprep.subr.bf16.mxu0 %v1333
    %1484 = vmatpush1.bf16.msra.mxu0 %v1332
    %1485 = vmatprep.subr.bf16.mxu0 %v1335
    %1486 = vmatpush1.bf16.msra.mxu0 %v1334
    %1487 = vmatprep.subr.bf16.mxu0 %v1337
    %1488 = vmatpush1.bf16.msra.mxu0 %v1336
    %1489 = vmatprep.mubr.bf16.mxu0 %v983
    %1490 = vmatmul.mubr.bf16.gmra.mrb[0].mxu0 %v982
    %v1491 = vpop.f32.mrb[0].mxu0
    %v1492 = vadd.f32 0.0, %v1491
    %v1493 = vpop.f32.mrb[0].mxu0
    %v1494 = vadd.f32 0.0, %v1493
    %v1495 = vpop.f32.mrb[0].mxu0
    %v1496 = vadd.f32 0.0, %v1495
    %v1497 = vpop.f32.mrb[0].mxu0
    %v1498 = vadd.f32 0.0, %v1497
    %1499 = vmatprep.mubr.bf16.mxu0 %v991
    %1500 = vmatmul.mubr.bf16.gmra.mrb[0].mxu0 %v990
    %v1501 = vpop.f32.mrb[0].mxu0
    %v1502 = vadd.f32 0.0, %v1501
    %v1503 = vpop.f32.mrb[0].mxu0
    %v1504 = vadd.f32 0.0, %v1503
    %v1505 = vpop.f32.mrb[0].mxu0
    %v1506 = vadd.f32 0.0, %v1505
    %v1507 = vpop.f32.mrb[0].mxu0
    %v1508 = vadd.f32 0.0, %v1507
    %1509 = vmatprep.mubr.bf16.mxu0 %v999
    %1510 = vmatmul.mubr.bf16.gmra.mrb[0].mxu0 %v998
    %v1511 = vpop.f32.mrb[0].mxu0
    %v1512 = vadd.f32 0.0, %v1511
    %v1513 = vpop.f32.mrb[0].mxu0
    %v1514 = vadd.f32 0.0, %v1513
    %v1515 = vpop.f32.mrb[0].mxu0
    %v1516 = vadd.f32 0.0, %v1515
    %v1517 = vpop.f32.mrb[0].mxu0
    %v1518 = vadd.f32 0.0, %v1517
    %1519 = vmatprep.mubr.bf16.mxu0 %v1007
    %1520 = vmatmul.mubr.bf16.gmra.mrb[0].mxu0 %v1006
    %v1521 = vpop.f32.mrb[0].mxu0
    %v1522 = vadd.f32 0.0, %v1521
    %v1523 = vpop.f32.mrb[0].mxu0
    %v1524 = vadd.f32 0.0, %v1523
    %v1525 = vpop.f32.mrb[0].mxu0
    %v1526 = vadd.f32 0.0, %v1525
    %v1527 = vpop.f32.mrb[0].mxu0
    %v1528 = vadd.f32 0.0, %v1527
    %1529 = vmatprep.mubr.bf16.mxu0 %v1015
    %1530 = vmatmul.mubr.bf16.gmra.mrb[0].mxu0 %v1014
    %v1531 = vpop.f32.mrb[0].mxu0
    %v1532 = vadd.f32 0.0, %v1531
    %v1533 = vpop.f32.mrb[0].mxu0
    %v1534 = vadd.f32 0.0, %v1533
    %v1535 = vpop.f32.mrb[0].mxu0
    %v1536 = vadd.f32 0.0, %v1535
    %v1537 = vpop.f32.mrb[0].mxu0
    %v1538 = vadd.f32 0.0, %v1537
    %1539 = vmatprep.mubr.bf16.mxu0 %v1023
    %1540 = vmatmul.mubr.bf16.gmra.mrb[0].mxu0 %v1022
    %v1541 = vpop.f32.mrb[0].mxu0
    %v1542 = vadd.f32 0.0, %v1541
    %v1543 = vpop.f32.mrb[0].mxu0
    %v1544 = vadd.f32 0.0, %v1543
    %v1545 = vpop.f32.mrb[0].mxu0
    %v1546 = vadd.f32 0.0, %v1545
    %v1547 = vpop.f32.mrb[0].mxu0
    %v1548 = vadd.f32 0.0, %v1547
    %1549 = vmatprep.mubr.bf16.mxu0 %v1031
    %1550 = vmatmul.mubr.bf16.gmra.mrb[0].mxu0 %v1030
    %v1551 = vpop.f32.mrb[0].mxu0
    %v1552 = vadd.f32 0.0, %v1551
    %v1553 = vpop.f32.mrb[0].mxu0
    %v1554 = vadd.f32 0.0, %v1553
    %v1555 = vpop.f32.mrb[0].mxu0
    %v1556 = vadd.f32 0.0, %v1555
    %v1557 = vpop.f32.mrb[0].mxu0
    %v1558 = vadd.f32 0.0, %v1557
    %1559 = vmatprep.mubr.bf16.mxu0 %v1039
    %1560 = vmatmul.mubr.bf16.gmra.mrb[0].mxu0 %v1038
    %v1561 = vpop.f32.mrb[0].mxu0
    %v1562 = vadd.f32 0.0, %v1561
    %v1563 = vpop.f32.mrb[0].mxu0
    %v1564 = vadd.f32 0.0, %v1563
    %v1565 = vpop.f32.mrb[0].mxu0
    %v1566 = vadd.f32 0.0, %v1565
    %v1567 = vpop.f32.mrb[0].mxu0
    %v1568 = vadd.f32 0.0, %v1567
    %1569 = vmatprep.mubr.bf16.mxu0 %v1047
    %1570 = vmatmul.mubr.bf16.gmra.mrb[0].mxu0 %v1046
    %v1571 = vpop.f32.mrb[0].mxu0
    %v1572 = vadd.f32 0.0, %v1571
    %v1573 = vpop.f32.mrb[0].mxu0
    %v1574 = vadd.f32 0.0, %v1573
    %v1575 = vpop.f32.mrb[0].mxu0
    %v1576 = vadd.f32 0.0, %v1575
    %v1577 = vpop.f32.mrb[0].mxu0
    %v1578 = vadd.f32 0.0, %v1577
    %1579 = vmatprep.mubr.bf16.mxu0 %v1055
    %1580 = vmatmul.mubr.bf16.gmra.mrb[0].mxu0 %v1054
    %v1581 = vpop.f32.mrb[0].mxu0
    %v1582 = vadd.f32 0.0, %v1581
    %v1583 = vpop.f32.mrb[0].mxu0
    %v1584 = vadd.f32 0.0, %v1583
    %v1585 = vpop.f32.mrb[0].mxu0
    %v1586 = vadd.f32 0.0, %v1585
    %v1587 = vpop.f32.mrb[0].mxu0
    %v1588 = vadd.f32 0.0, %v1587
    %1589 = vdwg.mxu0
    %1590 = vmatprep.subr.bf16.mxu0 %v1339
    %1591 = vmatpush1.bf16.msra.mxu0 %v1338
    %1592 = vmatprep.subr.bf16.mxu0 %v1341
    %1593 = vmatpush1.bf16.msra.mxu0 %v1340
    %1594 = vmatprep.subr.bf16.mxu0 %v1343
    %1595 = vmatpush1.bf16.msra.mxu0 %v1342
    %1596 = vmatprep.subr.bf16.mxu0 %v1345
    %1597 = vmatpush1.bf16.msra.mxu0 %v1344
    %1598 = vmatprep.subr.bf16.mxu0 %v1347
    %1599 = vmatpush1.bf16.msra.mxu0 %v1346
    %1600 = vmatprep.subr.bf16.mxu0 %v1349
    %1601 = vmatpush1.bf16.msra.mxu0 %v1348
    %1602 = vmatprep.subr.bf16.mxu0 %v1351
    %1603 = vmatpush1.bf16.msra.mxu0 %v1350
    %1604 = vmatprep.subr.bf16.mxu0 %v1353
    %1605 = vmatpush1.bf16.msra.mxu0 %v1352
    %1606 = vmatprep.subr.bf16.mxu0 %v1355
    %1607 = vmatpush1.bf16.msra.mxu0 %v1354
    %1608 = vmatprep.subr.bf16.mxu0 %v1357
    %1609 = vmatpush1.bf16.msra.mxu0 %v1356
    %1610 = vmatprep.subr.bf16.mxu0 %v1359
    %1611 = vmatpush1.bf16.msra.mxu0 %v1358
    %1612 = vmatprep.subr.bf16.mxu0 %v1361
    %1613 = vmatpush1.bf16.msra.mxu0 %v1360
    %1614 = vmatprep.subr.bf16.mxu0 %v1363
    %1615 = vmatpush1.bf16.msra.mxu0 %v1362
    %1616 = vmatprep.subr.bf16.mxu0 %v1365
    %1617 = vmatpush1.bf16.msra.mxu0 %v1364
    %1618 = vmatprep.subr.bf16.mxu0 %v1367
    %1619 = vmatpush1.bf16.msra.mxu0 %v1366
    %1620 = vmatprep.subr.bf16.mxu0 %v1369
    %1621 = vmatpush1.bf16.msra.mxu0 %v1368
    %1622 = vmatprep.mubr.bf16.mxu0 %v985
    %1623 = vmatmul.mubr.bf16.gmra.mrb[0].mxu0 %v984
    %v1624 = vpop.f32.mrb[0].mxu0
    %v1625 = vadd.f32 %v1492, %v1624
    %v1626 = vpop.f32.mrb[0].mxu0
    %v1627 = vadd.f32 %v1494, %v1626
    %v1628 = vpop.f32.mrb[0].mxu0
    %v1629 = vadd.f32 %v1496, %v1628
    %v1630 = vpop.f32.mrb[0].mxu0
    %v1631 = vadd.f32 %v1498, %v1630
    %1632 = vmatprep.mubr.bf16.mxu0 %v993
    %1633 = vmatmul.mubr.bf16.gmra.mrb[0].mxu0 %v992
    %v1634 = vpop.f32.mrb[0].mxu0
    %v1635 = vadd.f32 %v1502, %v1634
    %v1636 = vpop.f32.mrb[0].mxu0
    %v1637 = vadd.f32 %v1504, %v1636
    %v1638 = vpop.f32.mrb[0].mxu0
    %v1639 = vadd.f32 %v1506, %v1638
    %v1640 = vpop.f32.mrb[0].mxu0
    %v1641 = vadd.f32 %v1508, %v1640
    %1642 = vmatprep.mubr.bf16.mxu0 %v1001
    %1643 = vmatmul.mubr.bf16.gmra.mrb[0].mxu0 %v1000
    %v1644 = vpop.f32.mrb[0].mxu0
    %v1645 = vadd.f32 %v1512, %v1644
    %v1646 = vpop.f32.mrb[0].mxu0
    %v1647 = vadd.f32 %v1514, %v1646
    %v1648 = vpop.f32.mrb[0].mxu0
    %v1649 = vadd.f32 %v1516, %v1648
    %v1650 = vpop.f32.mrb[0].mxu0
    %v1651 = vadd.f32 %v1518, %v1650
    %1652 = vmatprep.mubr.bf16.mxu0 %v1009
    %1653 = vmatmul.mubr.bf16.gmra.mrb[0].mxu0 %v1008
    %v1654 = vpop.f32.mrb[0].mxu0
    %v1655 = vadd.f32 %v1522, %v1654
    %v1656 = vpop.f32.mrb[0].mxu0
    %v1657 = vadd.f32 %v1524, %v1656
    %v1658 = vpop.f32.mrb[0].mxu0
    %v1659 = vadd.f32 %v1526, %v1658
    %v1660 = vpop.f32.mrb[0].mxu0
    %v1661 = vadd.f32 %v1528, %v1660
    %1662 = vmatprep.mubr.bf16.mxu0 %v1017
    %1663 = vmatmul.mubr.bf16.gmra.mrb[0].mxu0 %v1016
    %v1664 = vpop.f32.mrb[0].mxu0
    %v1665 = vadd.f32 %v1532, %v1664
    %v1666 = vpop.f32.mrb[0].mxu0
    %v1667 = vadd.f32 %v1534, %v1666
    %v1668 = vpop.f32.mrb[0].mxu0
    %v1669 = vadd.f32 %v1536, %v1668
    %v1670 = vpop.f32.mrb[0].mxu0
    %v1671 = vadd.f32 %v1538, %v1670
    %1672 = vmatprep.mubr.bf16.mxu0 %v1025
    %1673 = vmatmul.mubr.bf16.gmra.mrb[0].mxu0 %v1024
    %v1674 = vpop.f32.mrb[0].mxu0
    %v1675 = vadd.f32 %v1542, %v1674
    %v1676 = vpop.f32.mrb[0].mxu0
    %v1677 = vadd.f32 %v1544, %v1676
    %v1678 = vpop.f32.mrb[0].mxu0
    %v1679 = vadd.f32 %v1546, %v1678
    %v1680 = vpop.f32.mrb[0].mxu0
    %v1681 = vadd.f32 %v1548, %v1680
    %1682 = vmatprep.mubr.bf16.mxu0 %v1033
    %1683 = vmatmul.mubr.bf16.gmra.mrb[0].mxu0 %v1032
    %v1684 = vpop.f32.mrb[0].mxu0
    %v1685 = vadd.f32 %v1552, %v1684
    %v1686 = vpop.f32.mrb[0].mxu0
    %v1687 = vadd.f32 %v1554, %v1686
    %v1688 = vpop.f32.mrb[0].mxu0
    %v1689 = vadd.f32 %v1556, %v1688
    %v1690 = vpop.f32.mrb[0].mxu0
    %v1691 = vadd.f32 %v1558, %v1690
    %1692 = vmatprep.mubr.bf16.mxu0 %v1041
    %1693 = vmatmul.mubr.bf16.gmra.mrb[0].mxu0 %v1040
    %v1694 = vpop.f32.mrb[0].mxu0
    %v1695 = vadd.f32 %v1562, %v1694
    %v1696 = vpop.f32.mrb[0].mxu0
    %v1697 = vadd.f32 %v1564, %v1696
    %v1698 = vpop.f32.mrb[0].mxu0
    %v1699 = vadd.f32 %v1566, %v1698
    %v1700 = vpop.f32.mrb[0].mxu0
    %v1701 = vadd.f32 %v1568, %v1700
    %1702 = vmatprep.mubr.bf16.mxu0 %v1049
    %1703 = vmatmul.mubr.bf16.gmra.mrb[0].mxu0 %v1048
    %v1704 = vpop.f32.mrb[0].mxu0
    %v1705 = vadd.f32 %v1572, %v1704
    %v1706 = vpop.f32.mrb[0].mxu0
    %v1707 = vadd.f32 %v1574, %v1706
    %v1708 = vpop.f32.mrb[0].mxu0
    %v1709 = vadd.f32 %v1576, %v1708
    %v1710 = vpop.f32.mrb[0].mxu0
    %v1711 = vadd.f32 %v1578, %v1710
    %1712 = vmatprep.mubr.bf16.mxu0 %v1057
    %1713 = vmatmul.mubr.bf16.gmra.mrb[0].mxu0 %v1056
    %v1714 = vpop.f32.mrb[0].mxu0
    %v1715 = vadd.f32 %v1582, %v1714
    %v1716 = vpop.f32.mrb[0].mxu0
    %v1717 = vadd.f32 %v1584, %v1716
    %v1718 = vpop.f32.mrb[0].mxu0
    %v1719 = vadd.f32 %v1586, %v1718
    %v1720 = vpop.f32.mrb[0].mxu0
    %v1721 = vadd.f32 %v1588, %v1720
    %1722 = vdwg.mxu0
    %1723 = vmatprep.subr.bf16.mxu0 %v1371
    %1724 = vmatpush1.bf16.msra.mxu0 %v1370
    %1725 = vmatprep.subr.bf16.mxu0 %v1373
    %1726 = vmatpush1.bf16.msra.mxu0 %v1372
    %1727 = vmatprep.subr.bf16.mxu0 %v1375
    %1728 = vmatpush1.bf16.msra.mxu0 %v1374
    %1729 = vmatprep.subr.bf16.mxu0 %v1377
    %1730 = vmatpush1.bf16.msra.mxu0 %v1376
    %1731 = vmatprep.subr.bf16.mxu0 %v1379
    %1732 = vmatpush1.bf16.msra.mxu0 %v1378
    %1733 = vmatprep.subr.bf16.mxu0 %v1381
    %1734 = vmatpush1.bf16.msra.mxu0 %v1380
    %1735 = vmatprep.subr.bf16.mxu0 %v1383
    %1736 = vmatpush1.bf16.msra.mxu0 %v1382
    %1737 = vmatprep.subr.bf16.mxu0 %v1385
    %1738 = vmatpush1.bf16.msra.mxu0 %v1384
    %1739 = vmatprep.subr.bf16.mxu0 %v1387
    %1740 = vmatpush1.bf16.msra.mxu0 %v1386
    %1741 = vmatprep.subr.bf16.mxu0 %v1389
    %1742 = vmatpush1.bf16.msra.mxu0 %v1388
    %1743 = vmatprep.subr.bf16.mxu0 %v1391
    %1744 = vmatpush1.bf16.msra.mxu0 %v1390
    %1745 = vmatprep.subr.bf16.mxu0 %v1393
    %1746 = vmatpush1.bf16.msra.mxu0 %v1392
    %1747 = vmatprep.subr.bf16.mxu0 %v1395
    %1748 = vmatpush1.bf16.msra.mxu0 %v1394
    %1749 = vmatprep.subr.bf16.mxu0 %v1397
    %1750 = vmatpush1.bf16.msra.mxu0 %v1396
    %1751 = vmatprep.subr.bf16.mxu0 %v1399
    %1752 = vmatpush1.bf16.msra.mxu0 %v1398
    %1753 = vmatprep.subr.bf16.mxu0 %v1401
    %1754 = vmatpush1.bf16.msra.mxu0 %v1400
    %1755 = vmatprep.mubr.bf16.mxu0 %v987
    %1756 = vmatmul.mubr.bf16.gmra.mrb[0].mxu0 %v986
    %v1757 = vpop.f32.mrb[0].mxu0
    %v1758 = vadd.f32 %v1625, %v1757
    %v1759 = vpop.f32.mrb[0].mxu0
    %v1760 = vadd.f32 %v1627, %v1759
    %v1761 = vpop.f32.mrb[0].mxu0
    %v1762 = vadd.f32 %v1629, %v1761
    %v1763 = vpop.f32.mrb[0].mxu0
    %v1764 = vadd.f32 %v1631, %v1763
    %1765 = vmatprep.mubr.bf16.mxu0 %v995
    %1766 = vmatmul.mubr.bf16.gmra.mrb[0].mxu0 %v994
    %v1767 = vpop.f32.mrb[0].mxu0
    %v1768 = vadd.f32 %v1635, %v1767
    %v1769 = vpop.f32.mrb[0].mxu0
    %v1770 = vadd.f32 %v1637, %v1769
    %v1771 = vpop.f32.mrb[0].mxu0
    %v1772 = vadd.f32 %v1639, %v1771
    %v1773 = vpop.f32.mrb[0].mxu0
    %v1774 = vadd.f32 %v1641, %v1773
    %1775 = vmatprep.mubr.bf16.mxu0 %v1003
    %1776 = vmatmul.mubr.bf16.gmra.mrb[0].mxu0 %v1002
    %v1777 = vpop.f32.mrb[0].mxu0
    %v1778 = vadd.f32 %v1645, %v1777
    %v1779 = vpop.f32.mrb[0].mxu0
    %v1780 = vadd.f32 %v1647, %v1779
    %v1781 = vpop.f32.mrb[0].mxu0
    %v1782 = vadd.f32 %v1649, %v1781
    %v1783 = vpop.f32.mrb[0].mxu0
    %v1784 = vadd.f32 %v1651, %v1783
    %1785 = vmatprep.mubr.bf16.mxu0 %v1011
    %1786 = vmatmul.mubr.bf16.gmra.mrb[0].mxu0 %v1010
    %v1787 = vpop.f32.mrb[0].mxu0
    %v1788 = vadd.f32 %v1655, %v1787
    %v1789 = vpop.f32.mrb[0].mxu0
    %v1790 = vadd.f32 %v1657, %v1789
    %v1791 = vpop.f32.mrb[0].mxu0
    %v1792 = vadd.f32 %v1659, %v1791
    %v1793 = vpop.f32.mrb[0].mxu0
    %v1794 = vadd.f32 %v1661, %v1793
    %1795 = vmatprep.mubr.bf16.mxu0 %v1019
    %1796 = vmatmul.mubr.bf16.gmra.mrb[0].mxu0 %v1018
    %v1797 = vpop.f32.mrb[0].mxu0
    %v1798 = vadd.f32 %v1665, %v1797
    %v1799 = vpop.f32.mrb[0].mxu0
    %v1800 = vadd.f32 %v1667, %v1799
    %v1801 = vpop.f32.mrb[0].mxu0
    %v1802 = vadd.f32 %v1669, %v1801
    %v1803 = vpop.f32.mrb[0].mxu0
    %v1804 = vadd.f32 %v1671, %v1803
    %1805 = vmatprep.mubr.bf16.mxu0 %v1027
    %1806 = vmatmul.mubr.bf16.gmra.mrb[0].mxu0 %v1026
    %v1807 = vpop.f32.mrb[0].mxu0
    %v1808 = vadd.f32 %v1675, %v1807
    %v1809 = vpop.f32.mrb[0].mxu0
    %v1810 = vadd.f32 %v1677, %v1809
    %v1811 = vpop.f32.mrb[0].mxu0
    %v1812 = vadd.f32 %v1679, %v1811
    %v1813 = vpop.f32.mrb[0].mxu0
    %v1814 = vadd.f32 %v1681, %v1813
    %1815 = vmatprep.mubr.bf16.mxu0 %v1035
    %1816 = vmatmul.mubr.bf16.gmra.mrb[0].mxu0 %v1034
    %v1817 = vpop.f32.mrb[0].mxu0
    %v1818 = vadd.f32 %v1685, %v1817
    %v1819 = vpop.f32.mrb[0].mxu0
    %v1820 = vadd.f32 %v1687, %v1819
    %v1821 = vpop.f32.mrb[0].mxu0
    %v1822 = vadd.f32 %v1689, %v1821
    %v1823 = vpop.f32.mrb[0].mxu0
    %v1824 = vadd.f32 %v1691, %v1823
    %1825 = vmatprep.mubr.bf16.mxu0 %v1043
    %1826 = vmatmul.mubr.bf16.gmra.mrb[0].mxu0 %v1042
    %v1827 = vpop.f32.mrb[0].mxu0
    %v1828 = vadd.f32 %v1695, %v1827
    %v1829 = vpop.f32.mrb[0].mxu0
    %v1830 = vadd.f32 %v1697, %v1829
    %v1831 = vpop.f32.mrb[0].mxu0
    %v1832 = vadd.f32 %v1699, %v1831
    %v1833 = vpop.f32.mrb[0].mxu0
    %v1834 = vadd.f32 %v1701, %v1833
    %1835 = vmatprep.mubr.bf16.mxu0 %v1051
    %1836 = vmatmul.mubr.bf16.gmra.mrb[0].mxu0 %v1050
    %v1837 = vpop.f32.mrb[0].mxu0
    %v1838 = vadd.f32 %v1705, %v1837
    %v1839 = vpop.f32.mrb[0].mxu0
    %v1840 = vadd.f32 %v1707, %v1839
    %v1841 = vpop.f32.mrb[0].mxu0
    %v1842 = vadd.f32 %v1709, %v1841
    %v1843 = vpop.f32.mrb[0].mxu0
    %v1844 = vadd.f32 %v1711, %v1843
    %1845 = vmatprep.mubr.bf16.mxu0 %v1059
    %1846 = vmatmul.mubr.bf16.gmra.mrb[0].mxu0 %v1058
    %v1847 = vpop.f32.mrb[0].mxu0
    %v1848 = vadd.f32 %v1715, %v1847
    %v1849 = vpop.f32.mrb[0].mxu0
    %v1850 = vadd.f32 %v1717, %v1849
    %v1851 = vpop.f32.mrb[0].mxu0
    %v1852 = vadd.f32 %v1719, %v1851
    %v1853 = vpop.f32.mrb[0].mxu0
    %v1854 = vadd.f32 %v1721, %v1853
    %1855 = vdwg.mxu0
    %1856 = vmatprep.subr.bf16.mxu0 %v1403
    %1857 = vmatpush1.bf16.msra.mxu0 %v1402
    %1858 = vmatprep.subr.bf16.mxu0 %v1405
    %1859 = vmatpush1.bf16.msra.mxu0 %v1404
    %1860 = vmatprep.subr.bf16.mxu0 %v1407
    %1861 = vmatpush1.bf16.msra.mxu0 %v1406
    %1862 = vmatprep.subr.bf16.mxu0 %v1409
    %1863 = vmatpush1.bf16.msra.mxu0 %v1408
    %1864 = vmatprep.subr.bf16.mxu0 %v1411
    %1865 = vmatpush1.bf16.msra.mxu0 %v1410
    %1866 = vmatprep.subr.bf16.mxu0 %v1413
    %1867 = vmatpush1.bf16.msra.mxu0 %v1412
    %1868 = vmatprep.subr.bf16.mxu0 %v1415
    %1869 = vmatpush1.bf16.msra.mxu0 %v1414
    %1870 = vmatprep.subr.bf16.mxu0 %v1417
    %1871 = vmatpush1.bf16.msra.mxu0 %v1416
    %1872 = vmatprep.subr.bf16.mxu0 %v1419
    %1873 = vmatpush1.bf16.msra.mxu0 %v1418
    %1874 = vmatprep.subr.bf16.mxu0 %v1421
    %1875 = vmatpush1.bf16.msra.mxu0 %v1420
    %1876 = vmatprep.subr.bf16.mxu0 %v1423
    %1877 = vmatpush1.bf16.msra.mxu0 %v1422
    %1878 = vmatprep.subr.bf16.mxu0 %v1425
    %1879 = vmatpush1.bf16.msra.mxu0 %v1424
    %1880 = vmatprep.subr.bf16.mxu0 0
    %1881 = vmatpush1.bf16.msra.mxu0 0
    %1882 = vmatprep.subr.bf16.mxu0 0
    %1883 = vmatpush1.bf16.msra.mxu0 0
    %1884 = vmatprep.subr.bf16.mxu0 0
    %1885 = vmatpush1.bf16.msra.mxu0 0
    %1886 = vmatprep.subr.bf16.mxu0 0
    %1887 = vmatpush1.bf16.msra.mxu0 0
    %1888 = vmatprep.mubr.bf16.mxu0 %v1428
    %1889 = vmatmul.mubr.bf16.gmra.mrb[0].mxu0 %v988
    %v1890 = vpop.f32.mrb[0].mxu0
    %v1891 = vadd.f32 %v1758, %v1890
    %v1892 = vpop.f32.mrb[0].mxu0
    %v1893 = vadd.f32 %v1760, %v1892
    %v1894 = vpop.f32.mrb[0].mxu0
    %v1895 = vadd.f32 %v1762, %v1894
    %v1896 = vpop.f32.mrb[0].mxu0
    %v1897 = vadd.f32 %v1764, %v1896
    %1898 = vmatprep.mubr.bf16.mxu0 %v1431
    %1899 = vmatmul.mubr.bf16.gmra.mrb[0].mxu0 %v996
    %v1900 = vpop.f32.mrb[0].mxu0
    %v1901 = vadd.f32 %v1768, %v1900
    %v1902 = vpop.f32.mrb[0].mxu0
    %v1903 = vadd.f32 %v1770, %v1902
    %v1904 = vpop.f32.mrb[0].mxu0
    %v1905 = vadd.f32 %v1772, %v1904
    %v1906 = vpop.f32.mrb[0].mxu0
    %v1907 = vadd.f32 %v1774, %v1906
    %1908 = vmatprep.mubr.bf16.mxu0 %v1434
    %1909 = vmatmul.mubr.bf16.gmra.mrb[0].mxu0 %v1004
    %v1910 = vpop.f32.mrb[0].mxu0
    %v1911 = vadd.f32 %v1778, %v1910
    %v1912 = vpop.f32.mrb[0].mxu0
    %v1913 = vadd.f32 %v1780, %v1912
    %v1914 = vpop.f32.mrb[0].mxu0
    %v1915 = vadd.f32 %v1782, %v1914
    %v1916 = vpop.f32.mrb[0].mxu0
    %v1917 = vadd.f32 %v1784, %v1916
    %1918 = vmatprep.mubr.bf16.mxu0 %v1437
    %1919 = vmatmul.mubr.bf16.gmra.mrb[0].mxu0 %v1012
    %v1920 = vpop.f32.mrb[0].mxu0
    %v1921 = vadd.f32 %v1788, %v1920
    %v1922 = vpop.f32.mrb[0].mxu0
    %v1923 = vadd.f32 %v1790, %v1922
    %v1924 = vpop.f32.mrb[0].mxu0
    %v1925 = vadd.f32 %v1792, %v1924
    %v1926 = vpop.f32.mrb[0].mxu0
    %v1927 = vadd.f32 %v1794, %v1926
    %1928 = vmatprep.mubr.bf16.mxu0 %v1440
    %1929 = vmatmul.mubr.bf16.gmra.mrb[0].mxu0 %v1020
    %v1930 = vpop.f32.mrb[0].mxu0
    %v1931 = vadd.f32 %v1798, %v1930
    %v1932 = vpop.f32.mrb[0].mxu0
    %v1933 = vadd.f32 %v1800, %v1932
    %v1934 = vpop.f32.mrb[0].mxu0
    %v1935 = vadd.f32 %v1802, %v1934
    %v1936 = vpop.f32.mrb[0].mxu0
    %v1937 = vadd.f32 %v1804, %v1936
    %1938 = vmatprep.mubr.bf16.mxu0 %v1443
    %1939 = vmatmul.mubr.bf16.gmra.mrb[0].mxu0 %v1028
    %v1940 = vpop.f32.mrb[0].mxu0
    %v1941 = vadd.f32 %v1808, %v1940
    %v1942 = vpop.f32.mrb[0].mxu0
    %v1943 = vadd.f32 %v1810, %v1942
    %v1944 = vpop.f32.mrb[0].mxu0
    %v1945 = vadd.f32 %v1812, %v1944
    %v1946 = vpop.f32.mrb[0].mxu0
    %v1947 = vadd.f32 %v1814, %v1946
    %1948 = vmatprep.mubr.bf16.mxu0 %v1446
    %1949 = vmatmul.mubr.bf16.gmra.mrb[0].mxu0 %v1036
    %v1950 = vpop.f32.mrb[0].mxu0
    %v1951 = vadd.f32 %v1818, %v1950
    %v1952 = vpop.f32.mrb[0].mxu0
    %v1953 = vadd.f32 %v1820, %v1952
    %v1954 = vpop.f32.mrb[0].mxu0
    %v1955 = vadd.f32 %v1822, %v1954
    %v1956 = vpop.f32.mrb[0].mxu0
    %v1957 = vadd.f32 %v1824, %v1956
    %1958 = vmatprep.mubr.bf16.mxu0 %v1449
    %1959 = vmatmul.mubr.bf16.gmra.mrb[0].mxu0 %v1044
    %v1960 = vpop.f32.mrb[0].mxu0
    %v1961 = vadd.f32 %v1828, %v1960
    %v1962 = vpop.f32.mrb[0].mxu0
    %v1963 = vadd.f32 %v1830, %v1962
    %v1964 = vpop.f32.mrb[0].mxu0
    %v1965 = vadd.f32 %v1832, %v1964
    %v1966 = vpop.f32.mrb[0].mxu0
    %v1967 = vadd.f32 %v1834, %v1966
    %1968 = vmatprep.mubr.bf16.mxu0 %v1452
    %1969 = vmatmul.mubr.bf16.gmra.mrb[0].mxu0 %v1052
    %v1970 = vpop.f32.mrb[0].mxu0
    %v1971 = vadd.f32 %v1838, %v1970
    %v1972 = vpop.f32.mrb[0].mxu0
    %v1973 = vadd.f32 %v1840, %v1972
    %v1974 = vpop.f32.mrb[0].mxu0
    %v1975 = vadd.f32 %v1842, %v1974
    %v1976 = vpop.f32.mrb[0].mxu0
    %v1977 = vadd.f32 %v1844, %v1976
    %1978 = vmatprep.mubr.bf16.mxu0 %v1455
    %1979 = vmatmul.mubr.bf16.gmra.mrb[0].mxu0 %v1060
    %v1980 = vpop.f32.mrb[0].mxu0
    %v1981 = vadd.f32 %v1848, %v1980
    %v1982 = vpop.f32.mrb[0].mxu0
    %v1983 = vadd.f32 %v1850, %v1982
    %v1984 = vpop.f32.mrb[0].mxu0
    %v1985 = vadd.f32 %v1852, %v1984
    %v1986 = vpop.f32.mrb[0].mxu0
    %v1987 = vadd.f32 %v1854, %v1986
    %1988 = vdwg.mxu0
    %1989 = vst [vmem:[#allocation4] sm:$0xff] %v1891
    %vm1990 = vcmask 556032
    %1991 = vst.msk [vmem:[#allocation4 + $0x8] sm:$0xff] %vm1990, %v1893
    %1992 = vst [vmem:[#allocation4 + $0x10] sm:$0xff] %v1895
    %1993 = vst.msk [vmem:[#allocation4 + $0x18] sm:$0xff] %vm1990, %v1897
    %1994 = vst [vmem:[#allocation4 + $0x20] sm:$0xff] %v1901
    %1995 = vst.msk [vmem:[#allocation4 + $0x28] sm:$0xff] %vm1990, %v1903
    %1996 = vst [vmem:[#allocation4 + $0x30] sm:$0xff] %v1905
    %1997 = vst.msk [vmem:[#allocation4 + $0x38] sm:$0xff] %vm1990, %v1907
    %1998 = vst [vmem:[#allocation4 + $0x40] sm:$0xff] %v1911
    %1999 = vst.msk [vmem:[#allocation4 + $0x48] sm:$0xff] %vm1990, %v1913
    %2000 = vst [vmem:[#allocation4 + $0x50] sm:$0xff] %v1915
    %2001 = vst.msk [vmem:[#allocation4 + $0x58] sm:$0xff] %vm1990, %v1917
    %2002 = vst [vmem:[#allocation4 + $0x60] sm:$0xff] %v1921
    %2003 = vst.msk [vmem:[#allocation4 + $0x68] sm:$0xff] %vm1990, %v1923
    %2004 = vst [vmem:[#allocation4 + $0x70] sm:$0xff] %v1925
    %2005 = vst.msk [vmem:[#allocation4 + $0x78] sm:$0xff] %vm1990, %v1927
    %2006 = vst [vmem:[#allocation4 + $0x80] sm:$0xff] %v1931
    %2007 = vst.msk [vmem:[#allocation4 + $0x88] sm:$0xff] %vm1990, %v1933
    %2008 = vst [vmem:[#allocation4 + $0x90] sm:$0xff] %v1935
    %2009 = vst.msk [vmem:[#allocation4 + $0x98] sm:$0xff] %vm1990, %v1937
    %2010 = vst [vmem:[#allocation4 + $0xa0] sm:$0xff] %v1941
    %2011 = vst.msk [vmem:[#allocation4 + $0xa8] sm:$0xff] %vm1990, %v1943
    %2012 = vst [vmem:[#allocation4 + $0xb0] sm:$0xff] %v1945
    %2013 = vst.msk [vmem:[#allocation4 + $0xb8] sm:$0xff] %vm1990, %v1947
    %2014 = vst [vmem:[#allocation4 + $0xc0] sm:$0xff] %v1951
    %2015 = vst.msk [vmem:[#allocation4 + $0xc8] sm:$0xff] %vm1990, %v1953
    %2016 = vst [vmem:[#allocation4 + $0xd0] sm:$0xff] %v1955
    %2017 = vst.msk [vmem:[#allocation4 + $0xd8] sm:$0xff] %vm1990, %v1957
    %2018 = vst [vmem:[#allocation4 + $0xe0] sm:$0xff] %v1961
    %2019 = vst.msk [vmem:[#allocation4 + $0xe8] sm:$0xff] %vm1990, %v1963
    %2020 = vst [vmem:[#allocation4 + $0xf0] sm:$0xff] %v1965
    %2021 = vst.msk [vmem:[#allocation4 + $0xf8] sm:$0xff] %vm1990, %v1967
    %2022 = vst [vmem:[#allocation4 + $0x100] sm:$0xff] %v1971
    %2023 = vst.msk [vmem:[#allocation4 + $0x108] sm:$0xff] %vm1990, %v1973
    %2024 = vst [vmem:[#allocation4 + $0x110] sm:$0xff] %v1975
    %2025 = vst.msk [vmem:[#allocation4 + $0x118] sm:$0xff] %vm1990, %v1977
    %2026 = vst [vmem:[#allocation4 + $0x120] sm:$0xff] %v1981
    %2027 = vst.msk [vmem:[#allocation4 + $0x128] sm:$0xff] %vm1990, %v1983
    %2028 = vst [vmem:[#allocation4 + $0x130] sm:$0xff] %v1985
    %2029 = vst.msk [vmem:[#allocation4 + $0x138] sm:$0xff] %vm1990, %v1987
    // Predicated region
    $region44: #{tpu_custom_call.1} parent=1 // pred_check
      _
    $region45: #{tpu_custom_call.1} parent=1 // pred_check_branch
      %2031 = sbr.rel (0) target = $region47
    $region46: #{tpu_custom_call.1} parent=1 // pred_region
      %s2033 = ssub.s32 5120, 5120
      %2034 = vsyncadd [#allocation5], %s2033
      %s2035 = sshll.u32 [#allocation4], 4
      %s2036 = int_to_ptr.vmem [resolvable:$true] %s2035
      %2041 = dma.vmem_to_hbm [thread:$0]  %s2036, 5120, %s3, [#allocation5], 256, 256, 16
    $region47: #{tpu_custom_call.1} parent=1 // pred_fallthru
      _
    // Predicated region
    $region48: #{tpu_custom_call.1} parent=1 // pred_check
      _
    $region49: #{tpu_custom_call.1} parent=1 // pred_check_branch
      %2043 = sbr.rel (0) target = $region51
    $region50: #{tpu_custom_call.1} parent=1 // pred_region
      %2044 = dma.done [#allocation5], 5120
    $region51: #{tpu_custom_call.1} parent=1 // pred_fallthru
      _
    %2045 = vsyncpa [#allocation5], 1
  %2046 = vsyncmov [#allocation3]
  %s2047 = vpop.sfrf %2046
  %p2048 = scmp.eq.s32.totalorder %s2047, 0
  %p2049 = pneg %p2048
  %2051 = shalt.err (%p2049)

</llo_original>
